<compile_context>
chip_gen: v6e
topology: v6e:2x2x1
jax: 0.10.0
libtpu: 0.0.40
codegen_flags: <defaults>
</compile_context>

<pallas_src>
import math

import jax
import jax.numpy as jnp
import numpy as np
from jax import lax
from jax.experimental import pallas as pl
from jax.experimental.pallas import tpu as pltpu


def _round_up(n, m):
    return ((n + m - 1) // m) * m


def gru_kernel(x_ref, wih_ref, whh_ref, bi_ref, bhn_ref, wout_ref, bout_ref,
               out_ref, gi_ref):
    """One batch block of the whole GRU forward.

    x_ref   : (T*BB, I_pad)     time-major rows for this batch block (zero-padded)
    wih_ref : (I_pad, 3*H_pad)  fused input weights, gate order (r, z, n)
    whh_ref : (H_pad, 3*H_pad)  fused hidden weights, gate order (r, z, n)
    bi_ref  : (1, 3*H_pad)      b_ih (+ b_hh folded in for the r, z gates)
    bhn_ref : (1, H_pad)        b_hh of the n gate (must stay inside r * (...))
    wout_ref: (1, H_pad)        output Linear weight row (zero-padded)
    bout_ref: (1, 1)            output Linear bias
    out_ref : (BB, 1)
    gi_ref  : (T*BB, 3*H_pad)   VMEM scratch for the precomputed input projection
    """
    BB = out_ref.shape[0]
    T = x_ref.shape[0] // BB
    Hp = whh_ref.shape[0]

    # ---- Prologue: ONE fused input-projection GEMM for all timesteps & gates,
    # staged in VMEM scratch (not carried as live vregs across the unroll). ----
    gi_ref[...] = jnp.dot(x_ref[...], wih_ref[...],
                          preferred_element_type=jnp.float32) + bi_ref[...]

    # ---- Recurrence: fully unrolled (T is small & static); h is the only
    # long-lived value (BB x H_pad = 4 vregs).  One fused hidden GEMM per step;
    # gate slices sit exactly on 128-lane vreg boundaries. ----
    h = jnp.zeros((BB, Hp), jnp.float32)
    for t in range(T):
        gh = jnp.dot(h, whh_ref[...], preferred_element_type=jnp.float32)
        gi = gi_ref[t * BB:(t + 1) * BB, :]          # static, sublane-aligned
        r = jax.nn.sigmoid(gi[:, 0:Hp] + gh[:, 0:Hp])
        z = jax.nn.sigmoid(gi[:, Hp:2 * Hp] + gh[:, Hp:2 * Hp])
        n = jnp.tanh(gi[:, 2 * Hp:] + r * (gh[:, 2 * Hp:] + bhn_ref[...]))
        h = (1.0 - z) * n + z * h

    # ---- Epilogue: identity avg_pool (num_layers == 1), ReLU, Linear(H, 1)
    # as a VPU multiply + cross-lane reduce (no lane-width-1 matmul). ----
    h_relu = jnp.maximum(h, 0.0)
    out_ref[...] = (jnp.sum(h_relu * wout_ref[...], axis=-1, keepdims=True)
                    + bout_ref[...])


def _pack_params(params, I, H, I_pad, H_pad):
    """Split PyTorch-layout GRU params into fused, lane-aligned gate tiles."""

    def fuse_pad(w, in_dim, in_pad):
        # w: (3H, in_dim), gate-major rows (r, z, n) as in PyTorch.
        w3 = w.reshape(3, H, in_dim)                 # (3, H, in)
        w3 = jnp.transpose(w3, (0, 2, 1))            # (3, in, H)
        wp = (jnp.zeros((3, in_pad, H_pad), jnp.float32)
              .at[:, :in_dim, :H].set(w3))
        # -> (in_pad, 3*H_pad): gate g occupies lanes [g*H_pad, (g+1)*H_pad)
        return jnp.transpose(wp, (1, 0, 2)).reshape(in_pad, 3 * H_pad)

    wih = fuse_pad(params["wih"], I, I_pad)          # (I_pad, 3*H_pad)
    whh = fuse_pad(params["whh"], H, H_pad)          # (H_pad, 3*H_pad)

    bih3 = params["bih"].reshape(3, H)
    bhh3 = params["bhh"].reshape(3, H)
    bi = jnp.zeros((3, H_pad), jnp.float32)
    bi = bi.at[0, :H].set(bih3[0] + bhh3[0])         # r gate: merging b_hh is safe
    bi = bi.at[1, :H].set(bih3[1] + bhh3[1])         # z gate: merging b_hh is safe
    bi = bi.at[2, :H].set(bih3[2])                   # n gate: b_ih only
    bi = bi.reshape(1, 3 * H_pad)
    bhn = jnp.zeros((1, H_pad), jnp.float32).at[:, :H].set(bhh3[2])  # stays in-loop

    wout = jnp.zeros((1, H_pad), jnp.float32).at[:, :H].set(params["wout"])
    bout = params["bout"].reshape(1, 1).astype(jnp.float32)
    return wih, whh, bi, bhn, wout, bout


def gru_forward(x, params, *, batch_block=8):
    """x: (B, T, I) float32, batch_first like the PyTorch module. Returns (B, 1)."""
    B, T, I = x.shape
    H = params["whh"].shape[1]

    BB = _round_up(max(batch_block, 8), 8)       # rows per batch block (sublane granule)
    B_pad = _round_up(max(B, BB), BB)
    I_pad = _round_up(max(I, 128), 128)          # lane granule
    H_pad = _round_up(max(H, 128), 128)          # lane granule
    num_bb = B_pad // BB

    # batch_first -> time-major; zero-pad batch/feature dims to hardware tiles,
    # then regroup so each batch block is a contiguous (T*BB, I_pad) slab of
    # time-major rows (one fused prologue GEMM per block).
    x_tbi = jnp.transpose(x.astype(jnp.float32), (1, 0, 2))
    x_pad = jnp.zeros((T, B_pad, I_pad), jnp.float32).at[:, :B, :I].set(x_tbi)
    x_blk = (x_pad.reshape(T, num_bb, BB, I_pad)
             .transpose(1, 0, 2, 3)
             .reshape(num_bb, T * BB, I_pad))

    wih, whh, bi, bhn, wout, bout = _pack_params(params, I, H, I_pad, H_pad)

    out = pl.pallas_call(
        gru_kernel,
        out_shape=jax.ShapeDtypeStruct((B_pad, 1), jnp.float32),
        grid=(num_bb,),
        in_specs=[
            pl.BlockSpec((None, T * BB, I_pad), lambda b: (b, 0, 0)),
            pl.BlockSpec((I_pad, 3 * H_pad), lambda b: (0, 0)),
            pl.BlockSpec((H_pad, 3 * H_pad), lambda b: (0, 0)),
            pl.BlockSpec((1, 3 * H_pad), lambda b: (0, 0)),
            pl.BlockSpec((1, H_pad), lambda b: (0, 0)),
            pl.BlockSpec((1, H_pad), lambda b: (0, 0)),
            pl.BlockSpec((1, 1), lambda b: (0, 0)),
        ],
        out_specs=pl.BlockSpec((BB, 1), lambda b: (b, 0)),
        scratch_shapes=[pltpu.VMEM((T * BB, 3 * H_pad), jnp.float32)],
        compiler_params=pltpu.CompilerParams(
            dimension_semantics=("parallel",)),   # second TC on v7x when batch grows
    )(x_blk, wih, whh, bi, bhn, wout, bout)
    return out[:B]


def init_params(key, input_size, hidden_size):
    """PyTorch-shaped GRU + Linear params, U(-1/sqrt(H), 1/sqrt(H)) init."""
    k = 1.0 / math.sqrt(hidden_size)
    keys = jax.random.split(key, 6)
    return {
        "wih": jax.random.uniform(keys[0], (3 * hidden_size, input_size), jnp.float32, -k, k),
        "whh": jax.random.uniform(keys[1], (3 * hidden_size, hidden_size), jnp.float32, -k, k),
        "bih": jax.random.uniform(keys[2], (3 * hidden_size,), jnp.float32, -k, k),
        "bhh": jax.random.uniform(keys[3], (3 * hidden_size,), jnp.float32, -k, k),
        "wout": jax.random.uniform(keys[4], (1, hidden_size), jnp.float32, -k, k),
        "bout": jax.random.uniform(keys[5], (1,), jnp.float32, -k, k),
    }


def gru_reference(x, params):
    """Pure-JAX reference (PyTorch GRU semantics) for correctness checking."""
    B, T, I = x.shape
    H = params["whh"].shape[1]
    wih_t = params["wih"].T   # (I, 3H)
    whh_t = params["whh"].T   # (H, 3H)
    bih = params["bih"]
    bhh = params["bhh"]
    h0 = jnp.zeros((B, H), jnp.float32)

    def step(h, x_t):
        gi = x_t @ wih_t + bih
        gh = h @ whh_t + bhh
        r = jax.nn.sigmoid(gi[:, :H] + gh[:, :H])
        z = jax.nn.sigmoid(gi[:, H:2 * H] + gh[:, H:2 * H])
        n = jnp.tanh(gi[:, 2 * H:] + r * gh[:, 2 * H:])
        return (1.0 - z) * n + z * h, None

    with jax.default_matmul_precision("float32"):
        h_final, _ = lax.scan(step, h0, jnp.transpose(x, (1, 0, 2)))
        h_relu = jnp.maximum(h_final, 0.0)
        return h_relu @ params["wout"].T + params["bout"]


if __name__ == "__main__":
    B, T, I, H = 4, 8, 8, 32
    key = jax.random.PRNGKey(0)
    kx, kp = jax.random.split(key)
    x = jax.random.normal(kx, (B, T, I), jnp.float32)
    params = init_params(kp, I, H)

    out = jax.block_until_ready(gru_forward(x, params))
    ref = jax.block_until_ready(gru_reference(x, params))

    assert out.shape == (B, 1)
    np.testing.assert_allclose(np.asarray(out), np.asarray(ref), atol=1e-4, rtol=1e-4)

    print("KERNEL_OK")
</pallas_src>

<mosaic_0001>
module attributes {stable_mosaic.version = 11 : i64} {
  func.func @gru_kernel(%arg0: i32, %arg1: memref<1x64x128xf32, #tpu.memory_space<vmem>>, %arg2: memref<128x384xf32, #tpu.memory_space<vmem>>, %arg3: memref<128x384xf32, #tpu.memory_space<vmem>>, %arg4: memref<1x384xf32, #tpu.memory_space<vmem>>, %arg5: memref<1x128xf32, #tpu.memory_space<vmem>>, %arg6: memref<1x128xf32, #tpu.memory_space<vmem>>, %arg7: memref<1x1xf32, #tpu.memory_space<vmem>>, %arg8: memref<8x1xf32, #tpu.memory_space<vmem>>, %arg9: memref<64x384xf32, #tpu.memory_space<vmem>>) attributes {dimension_semantics = [#tpu.dimension_semantics<parallel>], iteration_bounds = array<i64: 1>, scalar_prefetch = 0 : i64, scratch_operands = 1 : i64, tpu.core_type = #tpu.core_type<tc>, window_params = [{transform_indices = @transform_0, window_bounds = array<i64: 1, 64, 128>}, {pipeline_mode = #tpu.pipeline_mode<synchronous>, transform_indices = @transform_1, window_bounds = array<i64: 128, 384>}, {pipeline_mode = #tpu.pipeline_mode<synchronous>, transform_indices = @transform_2, window_bounds = array<i64: 128, 384>}, {pipeline_mode = #tpu.pipeline_mode<synchronous>, transform_indices = @transform_3, window_bounds = array<i64: 1, 384>}, {pipeline_mode = #tpu.pipeline_mode<synchronous>, transform_indices = @transform_4, window_bounds = array<i64: 1, 128>}, {pipeline_mode = #tpu.pipeline_mode<synchronous>, transform_indices = @transform_5, window_bounds = array<i64: 1, 128>}, {pipeline_mode = #tpu.pipeline_mode<synchronous>, transform_indices = @transform_6, window_bounds = array<i64: 1, 1>}, {transform_indices = @transform_7, window_bounds = array<i64: 8, 1>}]} {
    %c0 = arith.constant 0 : index
    %c0_0 = arith.constant 0 : index
    %c0_1 = arith.constant 0 : index
    %0 = vector.load %arg1[%c0, %c0_0, %c0_1] : memref<1x64x128xf32, #tpu.memory_space<vmem>>, vector<1x64x128xf32>
    %1 = vector.shape_cast %0 : vector<1x64x128xf32> to vector<64x128xf32>
    %c0_2 = arith.constant 0 : index
    %c0_3 = arith.constant 0 : index
    %2 = vector.load %arg2[%c0_2, %c0_3] : memref<128x384xf32, #tpu.memory_space<vmem>>, vector<128x384xf32>
    %cst = arith.constant dense<0.000000e+00> : vector<64x384xf32>
    %3 = tpu.matmul %1, %2, %cst {dimension_numbers = #tpu.dot_dimension_numbers<[1], [0], [0], [1], [0, 0, 1, 1], [], []>} : vector<64x128xf32>, vector<128x384xf32>, vector<64x384xf32> -> vector<64x384xf32>
    %c0_4 = arith.constant 0 : index
    %c0_5 = arith.constant 0 : index
    %4 = vector.load %arg4[%c0_4, %c0_5] : memref<1x384xf32, #tpu.memory_space<vmem>>, vector<1x384xf32>
    %5 = vector.broadcast %4 : vector<1x384xf32> to vector<64x384xf32>
    %6 = arith.addf %3, %5 : vector<64x384xf32>
    %c0_6 = arith.constant 0 : index
    %c0_7 = arith.constant 0 : index
    %7 = vector.load %arg9[%c0_6, %c0_7] : memref<64x384xf32, #tpu.memory_space<vmem>>, vector<64x384xf32>
    tpu.vector_store %arg9[%c0_6, %c0_7], %6 {strides = array<i32>} : memref<64x384xf32, #tpu.memory_space<vmem>>, vector<64x384xf32>,
    %cst_8 = arith.constant 0.000000e+00 : f32
    %8 = vector.broadcast %cst_8 : f32 to vector<8x128xf32>
    %c0_9 = arith.constant 0 : index
    %c0_10 = arith.constant 0 : index
    %9 = vector.load %arg3[%c0_9, %c0_10] : memref<128x384xf32, #tpu.memory_space<vmem>>, vector<128x384xf32>
    %cst_11 = arith.constant dense<0.000000e+00> : vector<8x384xf32>
    %10 = tpu.matmul %8, %9, %cst_11 {dimension_numbers = #tpu.dot_dimension_numbers<[1], [0], [0], [1], [0, 0, 1, 1], [], []>} : vector<8x128xf32>, vector<128x384xf32>, vector<8x384xf32> -> vector<8x384xf32>
    %c0_12 = arith.constant 0 : index
    %c0_13 = arith.constant 0 : index
    %11 = vector.load %arg9[%c0_12, %c0_13] : memref<64x384xf32, #tpu.memory_space<vmem>>, vector<8x384xf32>
    %12 = vector.extract_strided_slice %11 {offsets = [0, 0], sizes = [8, 128], strides = [1, 1]} : vector<8x384xf32> to vector<8x128xf32>
    %13 = vector.extract_strided_slice %10 {offsets = [0, 0], sizes = [8, 128], strides = [1, 1]} : vector<8x384xf32> to vector<8x128xf32>
    %14 = arith.addf %12, %13 : vector<8x128xf32>
    %15 = arith.negf %14 : vector<8x128xf32>
    %16 = math.exp %15 : vector<8x128xf32>
    %cst_14 = arith.constant 1.000000e+00 : f32
    %17 = vector.broadcast %cst_14 : f32 to vector<8x128xf32>
    %18 = arith.addf %17, %16 : vector<8x128xf32>
    %19 = arith.divf %17, %18 : vector<8x128xf32>
    %20 = vector.extract_strided_slice %11 {offsets = [0, 128], sizes = [8, 128], strides = [1, 1]} : vector<8x384xf32> to vector<8x128xf32>
    %21 = vector.extract_strided_slice %10 {offsets = [0, 128], sizes = [8, 128], strides = [1, 1]} : vector<8x384xf32> to vector<8x128xf32>
    %22 = arith.addf %20, %21 : vector<8x128xf32>
    %23 = arith.negf %22 : vector<8x128xf32>
    %24 = math.exp %23 : vector<8x128xf32>
    %cst_15 = arith.constant 1.000000e+00 : f32
    %25 = vector.broadcast %cst_15 : f32 to vector<8x128xf32>
    %26 = arith.addf %25, %24 : vector<8x128xf32>
    %27 = arith.divf %25, %26 : vector<8x128xf32>
    %28 = vector.extract_strided_slice %11 {offsets = [0, 256], sizes = [8, 128], strides = [1, 1]} : vector<8x384xf32> to vector<8x128xf32>
    %29 = vector.extract_strided_slice %10 {offsets = [0, 256], sizes = [8, 128], strides = [1, 1]} : vector<8x384xf32> to vector<8x128xf32>
    %c0_16 = arith.constant 0 : index
    %c0_17 = arith.constant 0 : index
    %30 = vector.load %arg5[%c0_16, %c0_17] : memref<1x128xf32, #tpu.memory_space<vmem>>, vector<1x128xf32>
    %31 = vector.broadcast %30 : vector<1x128xf32> to vector<8x128xf32>
    %32 = arith.addf %29, %31 : vector<8x128xf32>
    %33 = arith.mulf %19, %32 : vector<8x128xf32>
    %34 = arith.addf %28, %33 : vector<8x128xf32>
    %35 = math.tanh %34 : vector<8x128xf32>
    %cst_18 = arith.constant 1.000000e+00 : f32
    %36 = vector.broadcast %cst_18 : f32 to vector<8x128xf32>
    %37 = arith.subf %36, %27 : vector<8x128xf32>
    %38 = arith.mulf %37, %35 : vector<8x128xf32>
    %39 = arith.mulf %27, %8 : vector<8x128xf32>
    %40 = arith.addf %38, %39 : vector<8x128xf32>
    %c0_19 = arith.constant 0 : index
    %c0_20 = arith.constant 0 : index
    %41 = vector.load %arg3[%c0_19, %c0_20] : memref<128x384xf32, #tpu.memory_space<vmem>>, vector<128x384xf32>
    %cst_21 = arith.constant dense<0.000000e+00> : vector<8x384xf32>
    %42 = tpu.matmul %40, %41, %cst_21 {dimension_numbers = #tpu.dot_dimension_numbers<[1], [0], [0], [1], [0, 0, 1, 1], [], []>} : vector<8x128xf32>, vector<128x384xf32>, vector<8x384xf32> -> vector<8x384xf32>
    %c8 = arith.constant 8 : index
    %c0_22 = arith.constant 0 : index
    %43 = vector.load %arg9[%c8, %c0_22] : memref<64x384xf32, #tpu.memory_space<vmem>>, vector<8x384xf32>
    %44 = vector.extract_strided_slice %43 {offsets = [0, 0], sizes = [8, 128], strides = [1, 1]} : vector<8x384xf32> to vector<8x128xf32>
    %45 = vector.extract_strided_slice %42 {offsets = [0, 0], sizes = [8, 128], strides = [1, 1]} : vector<8x384xf32> to vector<8x128xf32>
    %46 = arith.addf %44, %45 : vector<8x128xf32>
    %47 = arith.negf %46 : vector<8x128xf32>
    %48 = math.exp %47 : vector<8x128xf32>
    %cst_23 = arith.constant 1.000000e+00 : f32
    %49 = vector.broadcast %cst_23 : f32 to vector<8x128xf32>
    %50 = arith.addf %49, %48 : vector<8x128xf32>
    %51 = arith.divf %49, %50 : vector<8x128xf32>
    %52 = vector.extract_strided_slice %43 {offsets = [0, 128], sizes = [8, 128], strides = [1, 1]} : vector<8x384xf32> to vector<8x128xf32>
    %53 = vector.extract_strided_slice %42 {offsets = [0, 128], sizes = [8, 128], strides = [1, 1]} : vector<8x384xf32> to vector<8x128xf32>
    %54 = arith.addf %52, %53 : vector<8x128xf32>
    %55 = arith.negf %54 : vector<8x128xf32>
    %56 = math.exp %55 : vector<8x128xf32>
    %cst_24 = arith.constant 1.000000e+00 : f32
    %57 = vector.broadcast %cst_24 : f32 to vector<8x128xf32>
    %58 = arith.addf %57, %56 : vector<8x128xf32>
    %59 = arith.divf %57, %58 : vector<8x128xf32>
    %60 = vector.extract_strided_slice %43 {offsets = [0, 256], sizes = [8, 128], strides = [1, 1]} : vector<8x384xf32> to vector<8x128xf32>
    %61 = vector.extract_strided_slice %42 {offsets = [0, 256], sizes = [8, 128], strides = [1, 1]} : vector<8x384xf32> to vector<8x128xf32>
    %c0_25 = arith.constant 0 : index
    %c0_26 = arith.constant 0 : index
    %62 = vector.load %arg5[%c0_25, %c0_26] : memref<1x128xf32, #tpu.memory_space<vmem>>, vector<1x128xf32>
    %63 = vector.broadcast %62 : vector<1x128xf32> to vector<8x128xf32>
    %64 = arith.addf %61, %63 : vector<8x128xf32>
    %65 = arith.mulf %51, %64 : vector<8x128xf32>
    %66 = arith.addf %60, %65 : vector<8x128xf32>
    %67 = math.tanh %66 : vector<8x128xf32>
    %cst_27 = arith.constant 1.000000e+00 : f32
    %68 = vector.broadcast %cst_27 : f32 to vector<8x128xf32>
    %69 = arith.subf %68, %59 : vector<8x128xf32>
    %70 = arith.mulf %69, %67 : vector<8x128xf32>
    %71 = arith.mulf %59, %40 : vector<8x128xf32>
    %72 = arith.addf %70, %71 : vector<8x128xf32>
    %c0_28 = arith.constant 0 : index
    %c0_29 = arith.constant 0 : index
    %73 = vector.load %arg3[%c0_28, %c0_29] : memref<128x384xf32, #tpu.memory_space<vmem>>, vector<128x384xf32>
    %cst_30 = arith.constant dense<0.000000e+00> : vector<8x384xf32>
    %74 = tpu.matmul %72, %73, %cst_30 {dimension_numbers = #tpu.dot_dimension_numbers<[1], [0], [0], [1], [0, 0, 1, 1], [], []>} : vector<8x128xf32>, vector<128x384xf32>, vector<8x384xf32> -> vector<8x384xf32>
    %c16 = arith.constant 16 : index
    %c0_31 = arith.constant 0 : index
    %75 = vector.load %arg9[%c16, %c0_31] : memref<64x384xf32, #tpu.memory_space<vmem>>, vector<8x384xf32>
    %76 = vector.extract_strided_slice %75 {offsets = [0, 0], sizes = [8, 128], strides = [1, 1]} : vector<8x384xf32> to vector<8x128xf32>
    %77 = vector.extract_strided_slice %74 {offsets = [0, 0], sizes = [8, 128], strides = [1, 1]} : vector<8x384xf32> to vector<8x128xf32>
    %78 = arith.addf %76, %77 : vector<8x128xf32>
    %79 = arith.negf %78 : vector<8x128xf32>
    %80 = math.exp %79 : vector<8x128xf32>
    %cst_32 = arith.constant 1.000000e+00 : f32
    %81 = vector.broadcast %cst_32 : f32 to vector<8x128xf32>
    %82 = arith.addf %81, %80 : vector<8x128xf32>
    %83 = arith.divf %81, %82 : vector<8x128xf32>
    %84 = vector.extract_strided_slice %75 {offsets = [0, 128], sizes = [8, 128], strides = [1, 1]} : vector<8x384xf32> to vector<8x128xf32>
    %85 = vector.extract_strided_slice %74 {offsets = [0, 128], sizes = [8, 128], strides = [1, 1]} : vector<8x384xf32> to vector<8x128xf32>
    %86 = arith.addf %84, %85 : vector<8x128xf32>
    %87 = arith.negf %86 : vector<8x128xf32>
    %88 = math.exp %87 : vector<8x128xf32>
    %cst_33 = arith.constant 1.000000e+00 : f32
    %89 = vector.broadcast %cst_33 : f32 to vector<8x128xf32>
    %90 = arith.addf %89, %88 : vector<8x128xf32>
    %91 = arith.divf %89, %90 : vector<8x128xf32>
    %92 = vector.extract_strided_slice %75 {offsets = [0, 256], sizes = [8, 128], strides = [1, 1]} : vector<8x384xf32> to vector<8x128xf32>
    %93 = vector.extract_strided_slice %74 {offsets = [0, 256], sizes = [8, 128], strides = [1, 1]} : vector<8x384xf32> to vector<8x128xf32>
    %c0_34 = arith.constant 0 : index
    %c0_35 = arith.constant 0 : index
    %94 = vector.load %arg5[%c0_34, %c0_35] : memref<1x128xf32, #tpu.memory_space<vmem>>, vector<1x128xf32>
    %95 = vector.broadcast %94 : vector<1x128xf32> to vector<8x128xf32>
    %96 = arith.addf %93, %95 : vector<8x128xf32>
    %97 = arith.mulf %83, %96 : vector<8x128xf32>
    %98 = arith.addf %92, %97 : vector<8x128xf32>
    %99 = math.tanh %98 : vector<8x128xf32>
    %cst_36 = arith.constant 1.000000e+00 : f32
    %100 = vector.broadcast %cst_36 : f32 to vector<8x128xf32>
    %101 = arith.subf %100, %91 : vector<8x128xf32>
    %102 = arith.mulf %101, %99 : vector<8x128xf32>
    %103 = arith.mulf %91, %72 : vector<8x128xf32>
    %104 = arith.addf %102, %103 : vector<8x128xf32>
    %c0_37 = arith.constant 0 : index
    %c0_38 = arith.constant 0 : index
    %105 = vector.load %arg3[%c0_37, %c0_38] : memref<128x384xf32, #tpu.memory_space<vmem>>, vector<128x384xf32>
    %cst_39 = arith.constant dense<0.000000e+00> : vector<8x384xf32>
    %106 = tpu.matmul %104, %105, %cst_39 {dimension_numbers = #tpu.dot_dimension_numbers<[1], [0], [0], [1], [0, 0, 1, 1], [], []>} : vector<8x128xf32>, vector<128x384xf32>, vector<8x384xf32> -> vector<8x384xf32>
    %c24 = arith.constant 24 : index
    %c0_40 = arith.constant 0 : index
    %107 = vector.load %arg9[%c24, %c0_40] : memref<64x384xf32, #tpu.memory_space<vmem>>, vector<8x384xf32>
    %108 = vector.extract_strided_slice %107 {offsets = [0, 0], sizes = [8, 128], strides = [1, 1]} : vector<8x384xf32> to vector<8x128xf32>
    %109 = vector.extract_strided_slice %106 {offsets = [0, 0], sizes = [8, 128], strides = [1, 1]} : vector<8x384xf32> to vector<8x128xf32>
    %110 = arith.addf %108, %109 : vector<8x128xf32>
    %111 = arith.negf %110 : vector<8x128xf32>
    %112 = math.exp %111 : vector<8x128xf32>
    %cst_41 = arith.constant 1.000000e+00 : f32
    %113 = vector.broadcast %cst_41 : f32 to vector<8x128xf32>
    %114 = arith.addf %113, %112 : vector<8x128xf32>
    %115 = arith.divf %113, %114 : vector<8x128xf32>
    %116 = vector.extract_strided_slice %107 {offsets = [0, 128], sizes = [8, 128], strides = [1, 1]} : vector<8x384xf32> to vector<8x128xf32>
    %117 = vector.extract_strided_slice %106 {offsets = [0, 128], sizes = [8, 128], strides = [1, 1]} : vector<8x384xf32> to vector<8x128xf32>
    %118 = arith.addf %116, %117 : vector<8x128xf32>
    %119 = arith.negf %118 : vector<8x128xf32>
    %120 = math.exp %119 : vector<8x128xf32>
    %cst_42 = arith.constant 1.000000e+00 : f32
    %121 = vector.broadcast %cst_42 : f32 to vector<8x128xf32>
    %122 = arith.addf %121, %120 : vector<8x128xf32>
    %123 = arith.divf %121, %122 : vector<8x128xf32>
    %124 = vector.extract_strided_slice %107 {offsets = [0, 256], sizes = [8, 128], strides = [1, 1]} : vector<8x384xf32> to vector<8x128xf32>
    %125 = vector.extract_strided_slice %106 {offsets = [0, 256], sizes = [8, 128], strides = [1, 1]} : vector<8x384xf32> to vector<8x128xf32>
    %c0_43 = arith.constant 0 : index
    %c0_44 = arith.constant 0 : index
    %126 = vector.load %arg5[%c0_43, %c0_44] : memref<1x128xf32, #tpu.memory_space<vmem>>, vector<1x128xf32>
    %127 = vector.broadcast %126 : vector<1x128xf32> to vector<8x128xf32>
    %128 = arith.addf %125, %127 : vector<8x128xf32>
    %129 = arith.mulf %115, %128 : vector<8x128xf32>
    %130 = arith.addf %124, %129 : vector<8x128xf32>
    %131 = math.tanh %130 : vector<8x128xf32>
    %cst_45 = arith.constant 1.000000e+00 : f32
    %132 = vector.broadcast %cst_45 : f32 to vector<8x128xf32>
    %133 = arith.subf %132, %123 : vector<8x128xf32>
    %134 = arith.mulf %133, %131 : vector<8x128xf32>
    %135 = arith.mulf %123, %104 : vector<8x128xf32>
    %136 = arith.addf %134, %135 : vector<8x128xf32>
    %c0_46 = arith.constant 0 : index
    %c0_47 = arith.constant 0 : index
    %137 = vector.load %arg3[%c0_46, %c0_47] : memref<128x384xf32, #tpu.memory_space<vmem>>, vector<128x384xf32>
    %cst_48 = arith.constant dense<0.000000e+00> : vector<8x384xf32>
    %138 = tpu.matmul %136, %137, %cst_48 {dimension_numbers = #tpu.dot_dimension_numbers<[1], [0], [0], [1], [0, 0, 1, 1], [], []>} : vector<8x128xf32>, vector<128x384xf32>, vector<8x384xf32> -> vector<8x384xf32>
    %c32 = arith.constant 32 : index
    %c0_49 = arith.constant 0 : index
    %139 = vector.load %arg9[%c32, %c0_49] : memref<64x384xf32, #tpu.memory_space<vmem>>, vector<8x384xf32>
    %140 = vector.extract_strided_slice %139 {offsets = [0, 0], sizes = [8, 128], strides = [1, 1]} : vector<8x384xf32> to vector<8x128xf32>
    %141 = vector.extract_strided_slice %138 {offsets = [0, 0], sizes = [8, 128], strides = [1, 1]} : vector<8x384xf32> to vector<8x128xf32>
    %142 = arith.addf %140, %141 : vector<8x128xf32>
    %143 = arith.negf %142 : vector<8x128xf32>
    %144 = math.exp %143 : vector<8x128xf32>
    %cst_50 = arith.constant 1.000000e+00 : f32
    %145 = vector.broadcast %cst_50 : f32 to vector<8x128xf32>
    %146 = arith.addf %145, %144 : vector<8x128xf32>
    %147 = arith.divf %145, %146 : vector<8x128xf32>
    %148 = vector.extract_strided_slice %139 {offsets = [0, 128], sizes = [8, 128], strides = [1, 1]} : vector<8x384xf32> to vector<8x128xf32>
    %149 = vector.extract_strided_slice %138 {offsets = [0, 128], sizes = [8, 128], strides = [1, 1]} : vector<8x384xf32> to vector<8x128xf32>
    %150 = arith.addf %148, %149 : vector<8x128xf32>
    %151 = arith.negf %150 : vector<8x128xf32>
    %152 = math.exp %151 : vector<8x128xf32>
    %cst_51 = arith.constant 1.000000e+00 : f32
    %153 = vector.broadcast %cst_51 : f32 to vector<8x128xf32>
    %154 = arith.addf %153, %152 : vector<8x128xf32>
    %155 = arith.divf %153, %154 : vector<8x128xf32>
    %156 = vector.extract_strided_slice %139 {offsets = [0, 256], sizes = [8, 128], strides = [1, 1]} : vector<8x384xf32> to vector<8x128xf32>
    %157 = vector.extract_strided_slice %138 {offsets = [0, 256], sizes = [8, 128], strides = [1, 1]} : vector<8x384xf32> to vector<8x128xf32>
    %c0_52 = arith.constant 0 : index
    %c0_53 = arith.constant 0 : index
    %158 = vector.load %arg5[%c0_52, %c0_53] : memref<1x128xf32, #tpu.memory_space<vmem>>, vector<1x128xf32>
    %159 = vector.broadcast %158 : vector<1x128xf32> to vector<8x128xf32>
    %160 = arith.addf %157, %159 : vector<8x128xf32>
    %161 = arith.mulf %147, %160 : vector<8x128xf32>
    %162 = arith.addf %156, %161 : vector<8x128xf32>
    %163 = math.tanh %162 : vector<8x128xf32>
    %cst_54 = arith.constant 1.000000e+00 : f32
    %164 = vector.broadcast %cst_54 : f32 to vector<8x128xf32>
    %165 = arith.subf %164, %155 : vector<8x128xf32>
    %166 = arith.mulf %165, %163 : vector<8x128xf32>
    %167 = arith.mulf %155, %136 : vector<8x128xf32>
    %168 = arith.addf %166, %167 : vector<8x128xf32>
    %c0_55 = arith.constant 0 : index
    %c0_56 = arith.constant 0 : index
    %169 = vector.load %arg3[%c0_55, %c0_56] : memref<128x384xf32, #tpu.memory_space<vmem>>, vector<128x384xf32>
    %cst_57 = arith.constant dense<0.000000e+00> : vector<8x384xf32>
    %170 = tpu.matmul %168, %169, %cst_57 {dimension_numbers = #tpu.dot_dimension_numbers<[1], [0], [0], [1], [0, 0, 1, 1], [], []>} : vector<8x128xf32>, vector<128x384xf32>, vector<8x384xf32> -> vector<8x384xf32>
    %c40 = arith.constant 40 : index
    %c0_58 = arith.constant 0 : index
    %171 = vector.load %arg9[%c40, %c0_58] : memref<64x384xf32, #tpu.memory_space<vmem>>, vector<8x384xf32>
    %172 = vector.extract_strided_slice %171 {offsets = [0, 0], sizes = [8, 128], strides = [1, 1]} : vector<8x384xf32> to vector<8x128xf32>
    %173 = vector.extract_strided_slice %170 {offsets = [0, 0], sizes = [8, 128], strides = [1, 1]} : vector<8x384xf32> to vector<8x128xf32>
    %174 = arith.addf %172, %173 : vector<8x128xf32>
    %175 = arith.negf %174 : vector<8x128xf32>
    %176 = math.exp %175 : vector<8x128xf32>
    %cst_59 = arith.constant 1.000000e+00 : f32
    %177 = vector.broadcast %cst_59 : f32 to vector<8x128xf32>
    %178 = arith.addf %177, %176 : vector<8x128xf32>
    %179 = arith.divf %177, %178 : vector<8x128xf32>
    %180 = vector.extract_strided_slice %171 {offsets = [0, 128], sizes = [8, 128], strides = [1, 1]} : vector<8x384xf32> to vector<8x128xf32>
    %181 = vector.extract_strided_slice %170 {offsets = [0, 128], sizes = [8, 128], strides = [1, 1]} : vector<8x384xf32> to vector<8x128xf32>
    %182 = arith.addf %180, %181 : vector<8x128xf32>
    %183 = arith.negf %182 : vector<8x128xf32>
    %184 = math.exp %183 : vector<8x128xf32>
    %cst_60 = arith.constant 1.000000e+00 : f32
    %185 = vector.broadcast %cst_60 : f32 to vector<8x128xf32>
    %186 = arith.addf %185, %184 : vector<8x128xf32>
    %187 = arith.divf %185, %186 : vector<8x128xf32>
    %188 = vector.extract_strided_slice %171 {offsets = [0, 256], sizes = [8, 128], strides = [1, 1]} : vector<8x384xf32> to vector<8x128xf32>
    %189 = vector.extract_strided_slice %170 {offsets = [0, 256], sizes = [8, 128], strides = [1, 1]} : vector<8x384xf32> to vector<8x128xf32>
    %c0_61 = arith.constant 0 : index
    %c0_62 = arith.constant 0 : index
    %190 = vector.load %arg5[%c0_61, %c0_62] : memref<1x128xf32, #tpu.memory_space<vmem>>, vector<1x128xf32>
    %191 = vector.broadcast %190 : vector<1x128xf32> to vector<8x128xf32>
    %192 = arith.addf %189, %191 : vector<8x128xf32>
    %193 = arith.mulf %179, %192 : vector<8x128xf32>
    %194 = arith.addf %188, %193 : vector<8x128xf32>
    %195 = math.tanh %194 : vector<8x128xf32>
    %cst_63 = arith.constant 1.000000e+00 : f32
    %196 = vector.broadcast %cst_63 : f32 to vector<8x128xf32>
    %197 = arith.subf %196, %187 : vector<8x128xf32>
    %198 = arith.mulf %197, %195 : vector<8x128xf32>
    %199 = arith.mulf %187, %168 : vector<8x128xf32>
    %200 = arith.addf %198, %199 : vector<8x128xf32>
    %c0_64 = arith.constant 0 : index
    %c0_65 = arith.constant 0 : index
    %201 = vector.load %arg3[%c0_64, %c0_65] : memref<128x384xf32, #tpu.memory_space<vmem>>, vector<128x384xf32>
    %cst_66 = arith.constant dense<0.000000e+00> : vector<8x384xf32>
    %202 = tpu.matmul %200, %201, %cst_66 {dimension_numbers = #tpu.dot_dimension_numbers<[1], [0], [0], [1], [0, 0, 1, 1], [], []>} : vector<8x128xf32>, vector<128x384xf32>, vector<8x384xf32> -> vector<8x384xf32>
    %c48 = arith.constant 48 : index
    %c0_67 = arith.constant 0 : index
    %203 = vector.load %arg9[%c48, %c0_67] : memref<64x384xf32, #tpu.memory_space<vmem>>, vector<8x384xf32>
    %204 = vector.extract_strided_slice %203 {offsets = [0, 0], sizes = [8, 128], strides = [1, 1]} : vector<8x384xf32> to vector<8x128xf32>
    %205 = vector.extract_strided_slice %202 {offsets = [0, 0], sizes = [8, 128], strides = [1, 1]} : vector<8x384xf32> to vector<8x128xf32>
    %206 = arith.addf %204, %205 : vector<8x128xf32>
    %207 = arith.negf %206 : vector<8x128xf32>
    %208 = math.exp %207 : vector<8x128xf32>
    %cst_68 = arith.constant 1.000000e+00 : f32
    %209 = vector.broadcast %cst_68 : f32 to vector<8x128xf32>
    %210 = arith.addf %209, %208 : vector<8x128xf32>
    %211 = arith.divf %209, %210 : vector<8x128xf32>
    %212 = vector.extract_strided_slice %203 {offsets = [0, 128], sizes = [8, 128], strides = [1, 1]} : vector<8x384xf32> to vector<8x128xf32>
    %213 = vector.extract_strided_slice %202 {offsets = [0, 128], sizes = [8, 128], strides = [1, 1]} : vector<8x384xf32> to vector<8x128xf32>
    %214 = arith.addf %212, %213 : vector<8x128xf32>
    %215 = arith.negf %214 : vector<8x128xf32>
    %216 = math.exp %215 : vector<8x128xf32>
    %cst_69 = arith.constant 1.000000e+00 : f32
    %217 = vector.broadcast %cst_69 : f32 to vector<8x128xf32>
    %218 = arith.addf %217, %216 : vector<8x128xf32>
    %219 = arith.divf %217, %218 : vector<8x128xf32>
    %220 = vector.extract_strided_slice %203 {offsets = [0, 256], sizes = [8, 128], strides = [1, 1]} : vector<8x384xf32> to vector<8x128xf32>
    %221 = vector.extract_strided_slice %202 {offsets = [0, 256], sizes = [8, 128], strides = [1, 1]} : vector<8x384xf32> to vector<8x128xf32>
    %c0_70 = arith.constant 0 : index
    %c0_71 = arith.constant 0 : index
    %222 = vector.load %arg5[%c0_70, %c0_71] : memref<1x128xf32, #tpu.memory_space<vmem>>, vector<1x128xf32>
    %223 = vector.broadcast %222 : vector<1x128xf32> to vector<8x128xf32>
    %224 = arith.addf %221, %223 : vector<8x128xf32>
    %225 = arith.mulf %211, %224 : vector<8x128xf32>
    %226 = arith.addf %220, %225 : vector<8x128xf32>
    %227 = math.tanh %226 : vector<8x128xf32>
    %cst_72 = arith.constant 1.000000e+00 : f32
    %228 = vector.broadcast %cst_72 : f32 to vector<8x128xf32>
    %229 = arith.subf %228, %219 : vector<8x128xf32>
    %230 = arith.mulf %229, %227 : vector<8x128xf32>
    %231 = arith.mulf %219, %200 : vector<8x128xf32>
    %232 = arith.addf %230, %231 : vector<8x128xf32>
    %c0_73 = arith.constant 0 : index
    %c0_74 = arith.constant 0 : index
    %233 = vector.load %arg3[%c0_73, %c0_74] : memref<128x384xf32, #tpu.memory_space<vmem>>, vector<128x384xf32>
    %cst_75 = arith.constant dense<0.000000e+00> : vector<8x384xf32>
    %234 = tpu.matmul %232, %233, %cst_75 {dimension_numbers = #tpu.dot_dimension_numbers<[1], [0], [0], [1], [0, 0, 1, 1], [], []>} : vector<8x128xf32>, vector<128x384xf32>, vector<8x384xf32> -> vector<8x384xf32>
    %c56 = arith.constant 56 : index
    %c0_76 = arith.constant 0 : index
    %235 = vector.load %arg9[%c56, %c0_76] : memref<64x384xf32, #tpu.memory_space<vmem>>, vector<8x384xf32>
    %236 = vector.extract_strided_slice %235 {offsets = [0, 0], sizes = [8, 128], strides = [1, 1]} : vector<8x384xf32> to vector<8x128xf32>
    %237 = vector.extract_strided_slice %234 {offsets = [0, 0], sizes = [8, 128], strides = [1, 1]} : vector<8x384xf32> to vector<8x128xf32>
    %238 = arith.addf %236, %237 : vector<8x128xf32>
    %239 = arith.negf %238 : vector<8x128xf32>
    %240 = math.exp %239 : vector<8x128xf32>
    %cst_77 = arith.constant 1.000000e+00 : f32
    %241 = vector.broadcast %cst_77 : f32 to vector<8x128xf32>
    %242 = arith.addf %241, %240 : vector<8x128xf32>
    %243 = arith.divf %241, %242 : vector<8x128xf32>
    %244 = vector.extract_strided_slice %235 {offsets = [0, 128], sizes = [8, 128], strides = [1, 1]} : vector<8x384xf32> to vector<8x128xf32>
    %245 = vector.extract_strided_slice %234 {offsets = [0, 128], sizes = [8, 128], strides = [1, 1]} : vector<8x384xf32> to vector<8x128xf32>
    %246 = arith.addf %244, %245 : vector<8x128xf32>
    %247 = arith.negf %246 : vector<8x128xf32>
    %248 = math.exp %247 : vector<8x128xf32>
    %cst_78 = arith.constant 1.000000e+00 : f32
    %249 = vector.broadcast %cst_78 : f32 to vector<8x128xf32>
    %250 = arith.addf %249, %248 : vector<8x128xf32>
    %251 = arith.divf %249, %250 : vector<8x128xf32>
    %252 = vector.extract_strided_slice %235 {offsets = [0, 256], sizes = [8, 128], strides = [1, 1]} : vector<8x384xf32> to vector<8x128xf32>
    %253 = vector.extract_strided_slice %234 {offsets = [0, 256], sizes = [8, 128], strides = [1, 1]} : vector<8x384xf32> to vector<8x128xf32>
    %c0_79 = arith.constant 0 : index
    %c0_80 = arith.constant 0 : index
    %254 = vector.load %arg5[%c0_79, %c0_80] : memref<1x128xf32, #tpu.memory_space<vmem>>, vector<1x128xf32>
    %255 = vector.broadcast %254 : vector<1x128xf32> to vector<8x128xf32>
    %256 = arith.addf %253, %255 : vector<8x128xf32>
    %257 = arith.mulf %243, %256 : vector<8x128xf32>
    %258 = arith.addf %252, %257 : vector<8x128xf32>
    %259 = math.tanh %258 : vector<8x128xf32>
    %cst_81 = arith.constant 1.000000e+00 : f32
    %260 = vector.broadcast %cst_81 : f32 to vector<8x128xf32>
    %261 = arith.subf %260, %251 : vector<8x128xf32>
    %262 = arith.mulf %261, %259 : vector<8x128xf32>
    %263 = arith.mulf %251, %232 : vector<8x128xf32>
    %264 = arith.addf %262, %263 : vector<8x128xf32>
    %cst_82 = arith.constant 0.000000e+00 : f32
    %265 = vector.broadcast %cst_82 : f32 to vector<8x128xf32>
    %266 = arith.maximumf %264, %265 : vector<8x128xf32>
    %c0_83 = arith.constant 0 : index
    %c0_84 = arith.constant 0 : index
    %267 = vector.load %arg6[%c0_83, %c0_84] : memref<1x128xf32, #tpu.memory_space<vmem>>, vector<1x128xf32>
    %268 = vector.broadcast %267 : vector<1x128xf32> to vector<8x128xf32>
    %269 = arith.mulf %266, %268 : vector<8x128xf32>
    %cst_85 = arith.constant dense<0.000000e+00> : vector<8xf32>
    %270 = vector.multi_reduction <add>, %269, %cst_85 [1] : vector<8x128xf32> to vector<8xf32>
    %271 = vector.shape_cast %270 : vector<8xf32> to vector<8x1xf32>
    %c0_86 = arith.constant 0 : index
    %c0_87 = arith.constant 0 : index
    %272 = vector.load %arg7[%c0_86, %c0_87] : memref<1x1xf32, #tpu.memory_space<vmem>>, vector<1x1xf32>
    %273 = vector.broadcast %272 : vector<1x1xf32> to vector<8x1xf32>
    %274 = arith.addf %271, %273 : vector<8x1xf32>
    %c0_88 = arith.constant 0 : index
    %c0_89 = arith.constant 0 : index
    %275 = vector.load %arg8[%c0_88, %c0_89] : memref<8x1xf32, #tpu.memory_space<vmem>>, vector<8x1xf32>
    tpu.vector_store %arg8[%c0_88, %c0_89], %274 {strides = array<i32>} : memref<8x1xf32, #tpu.memory_space<vmem>>, vector<8x1xf32>,
    return
  }
  func.func @transform_0(%arg0: i32) -> (i32, i32, i32) {
    %c0_i32 = arith.constant 0 : i32
    %c0_i32_0 = arith.constant 0 : i32
    %c0_i32_1 = arith.constant 0 : i32
    return %arg0, %c0_i32, %c0_i32_0 : i32, i32, i32
  }
  func.func @transform_1(%arg0: i32) -> (i32, i32) {
    %c0_i32 = arith.constant 0 : i32
    %c0_i32_0 = arith.constant 0 : i32
    %c0_i32_1 = arith.constant 0 : i32
    return %c0_i32, %c0_i32_0 : i32, i32
  }
  func.func @transform_2(%arg0: i32) -> (i32, i32) {
    %c0_i32 = arith.constant 0 : i32
    %c0_i32_0 = arith.constant 0 : i32
    %c0_i32_1 = arith.constant 0 : i32
    return %c0_i32, %c0_i32_0 : i32, i32
  }
  func.func @transform_3(%arg0: i32) -> (i32, i32) {
    %c0_i32 = arith.constant 0 : i32
    %c0_i32_0 = arith.constant 0 : i32
    %c0_i32_1 = arith.constant 0 : i32
    return %c0_i32, %c0_i32_0 : i32, i32
  }
  func.func @transform_4(%arg0: i32) -> (i32, i32) {
    %c0_i32 = arith.constant 0 : i32
    %c0_i32_0 = arith.constant 0 : i32
    %c0_i32_1 = arith.constant 0 : i32
    return %c0_i32, %c0_i32_0 : i32, i32
  }
  func.func @transform_5(%arg0: i32) -> (i32, i32) {
    %c0_i32 = arith.constant 0 : i32
    %c0_i32_0 = arith.constant 0 : i32
    %c0_i32_1 = arith.constant 0 : i32
    return %c0_i32, %c0_i32_0 : i32, i32
  }
  func.func @transform_6(%arg0: i32) -> (i32, i32) {
    %c0_i32 = arith.constant 0 : i32
    %c0_i32_0 = arith.constant 0 : i32
    %c0_i32_1 = arith.constant 0 : i32
    return %c0_i32, %c0_i32_0 : i32, i32
  }
  func.func @transform_7(%arg0: i32) -> (i32, i32) {
    %c0_i32 = arith.constant 0 : i32
    %c0_i32_0 = arith.constant 0 : i32
    return %arg0, %c0_i32 : i32, i32
  }
}

</mosaic_0001>

<llo_original>
// kernel: tpu_custom_call.1
$region0: #{tpu_custom_call.1}
  #allocation0 [shape = 'u32[]', space=smem, size = 0x4, offset = 0x4, fixed_abs, tag = 'smem constant byte address 0x4 - core index']
  #allocation1 [shape = 'u32[144,128]{1,0:T(1,128)}', space=vmem, size = 0x12000, scoped, tag = 'internal scratch']
  #allocation2 [shape = 'f32[64,384]{1,0:T(8,128)}', space=vmem, size = 0x18000, scoped, tag = 'scratch operand']
  #allocation3 [shape = 'f32[1,1]{1,0:T(1,128)S(1)}', space=vmem, size = 0x200, scoped, tag = 'scoped memory for tpu_custom_call.1']
  %s0 = inlined_call_operand.hbm [shape: f32[1,64,128], index: 0, kind: input, shape index: {}]
  %s1 = inlined_call_operand.hbm [shape: f32[128,384], index: 1, kind: input, shape index: {}]
  %s2 = inlined_call_operand.hbm [shape: f32[128,384], index: 2, kind: input, shape index: {}]
  %s3 = inlined_call_operand.vmem [shape: f32[1,384], index: 3, kind: input, shape index: {}]
  %s4 = inlined_call_operand.vmem [shape: f32[1,128], index: 4, kind: input, shape index: {}]
  %s5 = inlined_call_operand.vmem [shape: f32[1,128], index: 5, kind: input, shape index: {}]
  %s6 = inlined_call_operand.<no memory space> [shape: f32[1,1], index: 6, kind: input, shape index: {}]
  %s7 = inlined_call_operand.vmem [shape: f32[8,1], index: 7, kind: output, shape index: {}]
  %s8 = sld [smem:[#allocation0]]
  $region50: #{tpu_custom_call.1} parent=0
    _
  %s10 = ssub.s32 1, %s8
  %s11 = scalar_select 0, %s10, %s8
  %v12 = vstv %s6
  %13 = vst [vmem:[#allocation3] sm:$0x1] %v12
  $region1: #{tpu_custom_call.1} parent=0
    #allocation4 [shape = 'u8[32768]{0}', space=vmem, size = 0x8000, scoped, tag = 'input window, operand 0, single buffered']
    #allocation5 [shape = 's32[1]{0}', space=sflag, size = 0x4, scoped, tag = 'scoped memory for tpu_custom_call.1']
    #allocation6 [shape = 'u8[196608]{0}', space=vmem, size = 0x30000, scoped, tag = 'input window, operand 1, single buffered']
    #allocation7 [shape = 's32[1]{0}', space=sflag, size = 0x4, scoped, tag = 'scoped memory for tpu_custom_call.1']
    #allocation8 [shape = 'u8[196608]{0}', space=vmem, size = 0x30000, scoped, tag = 'input window, operand 2, single buffered']
    %14 = vsyncpa [#allocation5], 0
    %15 = vsyncpa [#allocation7], 0
    // Predicated region
    $region2: #{tpu_custom_call.1} parent=1 // pred_check
      _
    $region3: #{tpu_custom_call.1} parent=1 // pred_check_branch
      %17 = sbr.rel (0) target = $region5
    $region4: #{tpu_custom_call.1} parent=1 // pred_region
      %s19 = ssub.s32 1024, 1024
      %20 = vsyncadd [#allocation5], %s19
      %s21 = sshll.u32 [#allocation4], 4
      %s22 = int_to_ptr.vmem [resolvable:$true] %s21
      %27 = dma.hbm_to_vmem [thread:$0]  %s0, 1024, %s22, [#allocation5], 128, 128, 8
    $region5: #{tpu_custom_call.1} parent=1 // pred_fallthru
      _
    // Predicated region
    $region6: #{tpu_custom_call.1} parent=1 // pred_check
      _
    $region7: #{tpu_custom_call.1} parent=1 // pred_check_branch
      %29 = sbr.rel (0) target = $region9
    $region8: #{tpu_custom_call.1} parent=1 // pred_region
      %s31 = ssub.s32 6144, 6144
      %32 = vsyncadd [#allocation7], %s31
      %s33 = sshll.u32 [#allocation6], 4
      %s34 = int_to_ptr.vmem [resolvable:$true] %s33
      %39 = dma.hbm_to_vmem [thread:$0]  %s1, 6144, %s34, [#allocation7], 384, 384, 24
    $region9: #{tpu_custom_call.1} parent=1 // pred_fallthru
      _
    // Predicated region
    $region10: #{tpu_custom_call.1} parent=1 // pred_check
      _
    $region11: #{tpu_custom_call.1} parent=1 // pred_check_branch
      %41 = sbr.rel (0) target = $region13
    $region12: #{tpu_custom_call.1} parent=1 // pred_region
      %s43 = ssub.s32 6144, 6144
      %44 = vsyncadd [#allocation7], %s43
      %s45 = sshll.u32 [#allocation8], 4
      %s46 = int_to_ptr.vmem [resolvable:$true] %s45
      %51 = dma.hbm_to_vmem [thread:$0]  %s2, 6144, %s46, [#allocation7], 384, 384, 24
    $region13: #{tpu_custom_call.1} parent=1 // pred_fallthru
      _
    // Predicated region
    $region14: #{tpu_custom_call.1} parent=1 // pred_check
      _
    $region15: #{tpu_custom_call.1} parent=1 // pred_check_branch
      %53 = sbr.rel (0) target = $region17
    $region16: #{tpu_custom_call.1} parent=1 // pred_region
      _
    $region17: #{tpu_custom_call.1} parent=1 // pred_fallthru
      _
    // Predicated region
    $region18: #{tpu_custom_call.1} parent=1 // pred_check
      _
    $region19: #{tpu_custom_call.1} parent=1 // pred_check_branch
      %55 = sbr.rel (0) target = $region21
    $region20: #{tpu_custom_call.1} parent=1 // pred_region
      _
    $region21: #{tpu_custom_call.1} parent=1 // pred_fallthru
      _
    // Predicated region
    $region22: #{tpu_custom_call.1} parent=1 // pred_check
      _
    $region23: #{tpu_custom_call.1} parent=1 // pred_check_branch
      %57 = sbr.rel (0) target = $region25
    $region24: #{tpu_custom_call.1} parent=1 // pred_region
      _
    $region25: #{tpu_custom_call.1} parent=1 // pred_fallthru
      _
    // Predicated region
    $region26: #{tpu_custom_call.1} parent=1 // pred_check
      _
    $region27: #{tpu_custom_call.1} parent=1 // pred_check_branch
      %59 = sbr.rel (0) target = $region29
    $region28: #{tpu_custom_call.1} parent=1 // pred_region
      _
    $region29: #{tpu_custom_call.1} parent=1 // pred_fallthru
      _
    // Predicated region
    $region30: #{tpu_custom_call.1} parent=1 // pred_check
      _
    $region31: #{tpu_custom_call.1} parent=1 // pred_check_branch
      %61 = sbr.rel (0) target = $region33
    $region32: #{tpu_custom_call.1} parent=1 // pred_region
      %62 = dma.done [#allocation5], 1024
    $region33: #{tpu_custom_call.1} parent=1 // pred_fallthru
      _
    // Predicated region
    $region34: #{tpu_custom_call.1} parent=1 // pred_check
      _
    $region35: #{tpu_custom_call.1} parent=1 // pred_check_branch
      %64 = sbr.rel (0) target = $region37
    $region36: #{tpu_custom_call.1} parent=1 // pred_region
      %65 = dma.done [#allocation7], 6144
    $region37: #{tpu_custom_call.1} parent=1 // pred_fallthru
      _
    // Predicated region
    $region38: #{tpu_custom_call.1} parent=1 // pred_check
      _
    $region39: #{tpu_custom_call.1} parent=1 // pred_check_branch
      %67 = sbr.rel (0) target = $region41
    $region40: #{tpu_custom_call.1} parent=1 // pred_region
      %68 = dma.done [#allocation7], 6144
    $region41: #{tpu_custom_call.1} parent=1 // pred_fallthru
      _
    %v69 = vld [vmem:[#allocation4] sm:$0xff]
    %v70 = vld [vmem:[#allocation4 + $0x8] sm:$0xff]
    %v71 = vld [vmem:[#allocation4 + $0x10] sm:$0xff]
    %v72 = vld [vmem:[#allocation4 + $0x18] sm:$0xff]
    %v73 = vld [vmem:[#allocation4 + $0x20] sm:$0xff]
    %v74 = vld [vmem:[#allocation4 + $0x28] sm:$0xff]
    %v75 = vld [vmem:[#allocation4 + $0x30] sm:$0xff]
    %v76 = vld [vmem:[#allocation4 + $0x38] sm:$0xff]
    %v77 = vld [vmem:[#allocation6] sm:$0xff]
    %v78 = vld [vmem:[#allocation6 + $0x8] sm:$0xff]
    %v79 = vld [vmem:[#allocation6 + $0x10] sm:$0xff]
    %v80 = vld [vmem:[#allocation6 + $0x18] sm:$0xff]
    %v81 = vld [vmem:[#allocation6 + $0x20] sm:$0xff]
    %v82 = vld [vmem:[#allocation6 + $0x28] sm:$0xff]
    %v83 = vld [vmem:[#allocation6 + $0x30] sm:$0xff]
    %v84 = vld [vmem:[#allocation6 + $0x38] sm:$0xff]
    %v85 = vld [vmem:[#allocation6 + $0x40] sm:$0xff]
    %v86 = vld [vmem:[#allocation6 + $0x48] sm:$0xff]
    %v87 = vld [vmem:[#allocation6 + $0x50] sm:$0xff]
    %v88 = vld [vmem:[#allocation6 + $0x58] sm:$0xff]
    %v89 = vld [vmem:[#allocation6 + $0x60] sm:$0xff]
    %v90 = vld [vmem:[#allocation6 + $0x68] sm:$0xff]
    %v91 = vld [vmem:[#allocation6 + $0x70] sm:$0xff]
    %v92 = vld [vmem:[#allocation6 + $0x78] sm:$0xff]
    %v93 = vld [vmem:[#allocation6 + $0x80] sm:$0xff]
    %v94 = vld [vmem:[#allocation6 + $0x88] sm:$0xff]
    %v95 = vld [vmem:[#allocation6 + $0x90] sm:$0xff]
    %v96 = vld [vmem:[#allocation6 + $0x98] sm:$0xff]
    %v97 = vld [vmem:[#allocation6 + $0xa0] sm:$0xff]
    %v98 = vld [vmem:[#allocation6 + $0xa8] sm:$0xff]
    %v99 = vld [vmem:[#allocation6 + $0xb0] sm:$0xff]
    %v100 = vld [vmem:[#allocation6 + $0xb8] sm:$0xff]
    %v101 = vld [vmem:[#allocation6 + $0xc0] sm:$0xff]
    %v102 = vld [vmem:[#allocation6 + $0xc8] sm:$0xff]
    %v103 = vld [vmem:[#allocation6 + $0xd0] sm:$0xff]
    %v104 = vld [vmem:[#allocation6 + $0xd8] sm:$0xff]
    %v105 = vld [vmem:[#allocation6 + $0xe0] sm:$0xff]
    %v106 = vld [vmem:[#allocation6 + $0xe8] sm:$0xff]
    %v107 = vld [vmem:[#allocation6 + $0xf0] sm:$0xff]
    %v108 = vld [vmem:[#allocation6 + $0xf8] sm:$0xff]
    %v109 = vld [vmem:[#allocation6 + $0x100] sm:$0xff]
    %v110 = vld [vmem:[#allocation6 + $0x108] sm:$0xff]
    %v111 = vld [vmem:[#allocation6 + $0x110] sm:$0xff]
    %v112 = vld [vmem:[#allocation6 + $0x118] sm:$0xff]
    %v113 = vld [vmem:[#allocation6 + $0x120] sm:$0xff]
    %v114 = vld [vmem:[#allocation6 + $0x128] sm:$0xff]
    %v115 = vld [vmem:[#allocation6 + $0x130] sm:$0xff]
    %v116 = vld [vmem:[#allocation6 + $0x138] sm:$0xff]
    %v117 = vld [vmem:[#allocation6 + $0x140] sm:$0xff]
    %v118 = vld [vmem:[#allocation6 + $0x148] sm:$0xff]
    %v119 = vld [vmem:[#allocation6 + $0x150] sm:$0xff]
    %v120 = vld [vmem:[#allocation6 + $0x158] sm:$0xff]
    %v121 = vld [vmem:[#allocation6 + $0x160] sm:$0xff]
    %v122 = vld [vmem:[#allocation6 + $0x168] sm:$0xff]
    %v123 = vld [vmem:[#allocation6 + $0x170] sm:$0xff]
    %v124 = vld [vmem:[#allocation6 + $0x178] sm:$0xff]
    %v125 = vld [vmem:[%s3] sm:$0x7]
    %v127 = vlaneseq
    %v128 = vshrl.u32 %v127, 7
    %v129 = vsub.s32 0, %v128
    %v130 = vrot.slane %v125, %v129
    %v131 = vlaneseq
    %v132 = vshrl.u32 %v131, 7
    %v133 = vsub.s32 1, %v132
    %v134 = vrot.slane %v125, %v133
    %v135 = vlaneseq
    %v136 = vshrl.u32 %v135, 7
    %v137 = vsub.s32 2, %v136
    %v138 = vrot.slane %v125, %v137
    %142 = vmatprep.subr.mxu0 %v123
    %143 = vmatpush1.msra.mxu0 %v122
    %144 = vmatprep.subr.mxu0 %v120
    %145 = vmatpush1.msra.mxu0 %v119
    %146 = vmatprep.subr.mxu0 %v117
    %147 = vmatpush1.msra.mxu0 %v116
    %148 = vmatprep.subr.mxu0 %v114
    %149 = vmatpush1.msra.mxu0 %v113
    %150 = vmatprep.subr.mxu0 %v111
    %151 = vmatpush1.msra.mxu0 %v110
    %152 = vmatprep.subr.mxu0 %v108
    %153 = vmatpush1.msra.mxu0 %v107
    %154 = vmatprep.subr.mxu0 %v105
    %155 = vmatpush1.msra.mxu0 %v104
    %156 = vmatprep.subr.mxu0 %v102
    %157 = vmatpush1.msra.mxu0 %v101
    %158 = vmatprep.subr.mxu0 %v99
    %159 = vmatpush1.msra.mxu0 %v98
    %160 = vmatprep.subr.mxu0 %v96
    %161 = vmatpush1.msra.mxu0 %v95
    %162 = vmatprep.subr.mxu0 %v93
    %163 = vmatpush1.msra.mxu0 %v92
    %164 = vmatprep.subr.mxu0 %v90
    %165 = vmatpush1.msra.mxu0 %v89
    %166 = vmatprep.subr.mxu0 %v87
    %167 = vmatpush1.msra.mxu0 %v86
    %168 = vmatprep.subr.mxu0 %v84
    %169 = vmatpush1.msra.mxu0 %v83
    %170 = vmatprep.subr.mxu0 %v81
    %171 = vmatpush1.msra.mxu0 %v80
    %172 = vmatprep.subr.mxu0 %v78
    %173 = vmatpush1.msra.mxu0 %v77
    %174 = vmatprep.subr.mxu0 0.0
    %175 = vmatpush2.msra.mxu0 0.0
    %176 = vmatprep.subr.mxu0 0.0
    %177 = vmatpush2.msra.mxu0 0.0
    %178 = vmatprep.subr.mxu0 0.0
    %179 = vmatpush2.msra.mxu0 0.0
    %180 = vmatprep.subr.mxu0 0.0
    %181 = vmatpush2.msra.mxu0 0.0
    %182 = vmatprep.subr.mxu0 0.0
    %183 = vmatpush2.msra.mxu0 0.0
    %184 = vmatprep.subr.mxu0 0.0
    %185 = vmatpush2.msra.mxu0 0.0
    %186 = vmatprep.subr.mxu0 0.0
    %187 = vmatpush2.msra.mxu0 0.0
    %188 = vmatprep.subr.mxu0 0.0
    %189 = vmatpush2.msra.mxu0 0.0
    %190 = vmatprep.subr.mxu0 0.0
    %191 = vmatpush2.msra.mxu0 0.0
    %192 = vmatprep.subr.mxu0 0.0
    %193 = vmatpush2.msra.mxu0 0.0
    %194 = vmatprep.subr.mxu0 0.0
    %195 = vmatpush2.msra.mxu0 0.0
    %196 = vmatprep.subr.mxu0 0.0
    %197 = vmatpush2.msra.mxu0 0.0
    %198 = vmatprep.subr.mxu0 0.0
    %199 = vmatpush2.msra.mxu0 0.0
    %200 = vmatprep.subr.mxu0 0.0
    %201 = vmatpush2.msra.mxu0 0.0
    %202 = vmatprep.subr.mxu0 0.0
    %203 = vmatpush2.msra.mxu0 0.0
    %204 = vmatprep.subr.mxu0 0.0
    %205 = vmatpush2.msra.mxu0 0.0
    %206 = vmatprep.mubr.f32.mxu0 0.0
    %207 = vmatmul.mubr.f32.gmra.mxu0 %v69
    %v208 = vpop.f32.mrf.mxu0
    %v209 = vadd.f32 %v130, %v208
    %v210 = vpop.f32.mrf.mxu0
    %v211 = vadd.f32 %v134, %v210
    %212 = vmatprep.mubr.f32.mxu0 0.0
    %213 = vmatmul.mubr.f32.gmra.mxu0 %v70
    %v214 = vpop.f32.mrf.mxu0
    %v215 = vadd.f32 %v130, %v214
    %v216 = vpop.f32.mrf.mxu0
    %v217 = vadd.f32 %v134, %v216
    %218 = vmatprep.mubr.f32.mxu0 0.0
    %219 = vmatmul.mubr.f32.gmra.mxu0 %v71
    %v220 = vpop.f32.mrf.mxu0
    %v221 = vadd.f32 %v130, %v220
    %v222 = vpop.f32.mrf.mxu0
    %v223 = vadd.f32 %v134, %v222
    %224 = vmatprep.mubr.f32.mxu0 0.0
    %225 = vmatmul.mubr.f32.gmra.mxu0 %v72
    %v226 = vpop.f32.mrf.mxu0
    %v227 = vadd.f32 %v130, %v226
    %v228 = vpop.f32.mrf.mxu0
    %v229 = vadd.f32 %v134, %v228
    %230 = vmatprep.mubr.f32.mxu0 0.0
    %231 = vmatmul.mubr.f32.gmra.mxu0 %v73
    %v232 = vpop.f32.mrf.mxu0
    %v233 = vadd.f32 %v130, %v232
    %v234 = vpop.f32.mrf.mxu0
    %v235 = vadd.f32 %v134, %v234
    %236 = vmatprep.mubr.f32.mxu0 0.0
    %237 = vmatmul.mubr.f32.gmra.mxu0 %v74
    %v238 = vpop.f32.mrf.mxu0
    %v239 = vadd.f32 %v130, %v238
    %v240 = vpop.f32.mrf.mxu0
    %v241 = vadd.f32 %v134, %v240
    %242 = vmatprep.mubr.f32.mxu0 0.0
    %243 = vmatmul.mubr.f32.gmra.mxu0 %v75
    %v244 = vpop.f32.mrf.mxu0
    %v245 = vadd.f32 %v130, %v244
    %v246 = vpop.f32.mrf.mxu0
    %v247 = vadd.f32 %v134, %v246
    %248 = vmatprep.mubr.f32.mxu0 0.0
    %249 = vmatmul.mubr.f32.gmra.mxu0 %v76
    %v250 = vpop.f32.mrf.mxu0
    %v251 = vadd.f32 %v130, %v250
    %v252 = vpop.f32.mrf.mxu0
    %v253 = vadd.f32 %v134, %v252
    %254 = vdwg.mxu0
    %255 = vmatprep.subr.mxu0 0.0
    %256 = vmatpush1.msra.mxu0 %v124
    %257 = vmatprep.subr.mxu0 0.0
    %258 = vmatpush1.msra.mxu0 %v121
    %259 = vmatprep.subr.mxu0 0.0
    %260 = vmatpush1.msra.mxu0 %v118
    %261 = vmatprep.subr.mxu0 0.0
    %262 = vmatpush1.msra.mxu0 %v115
    %263 = vmatprep.subr.mxu0 0.0
    %264 = vmatpush1.msra.mxu0 %v112
    %265 = vmatprep.subr.mxu0 0.0
    %266 = vmatpush1.msra.mxu0 %v109
    %267 = vmatprep.subr.mxu0 0.0
    %268 = vmatpush1.msra.mxu0 %v106
    %269 = vmatprep.subr.mxu0 0.0
    %270 = vmatpush1.msra.mxu0 %v103
    %271 = vmatprep.subr.mxu0 0.0
    %272 = vmatpush1.msra.mxu0 %v100
    %273 = vmatprep.subr.mxu0 0.0
    %274 = vmatpush1.msra.mxu0 %v97
    %275 = vmatprep.subr.mxu0 0.0
    %276 = vmatpush1.msra.mxu0 %v94
    %277 = vmatprep.subr.mxu0 0.0
    %278 = vmatpush1.msra.mxu0 %v91
    %279 = vmatprep.subr.mxu0 0.0
    %280 = vmatpush1.msra.mxu0 %v88
    %281 = vmatprep.subr.mxu0 0.0
    %282 = vmatpush1.msra.mxu0 %v85
    %283 = vmatprep.subr.mxu0 0.0
    %284 = vmatpush1.msra.mxu0 %v82
    %285 = vmatprep.subr.mxu0 0.0
    %286 = vmatpush1.msra.mxu0 %v79
    %287 = vmatprep.subr.mxu0 0.0
    %288 = vmatpush2.msra.mxu0 0.0
    %289 = vmatprep.subr.mxu0 0.0
    %290 = vmatpush2.msra.mxu0 0.0
    %291 = vmatprep.subr.mxu0 0.0
    %292 = vmatpush2.msra.mxu0 0.0
    %293 = vmatprep.subr.mxu0 0.0
    %294 = vmatpush2.msra.mxu0 0.0
    %295 = vmatprep.subr.mxu0 0.0
    %296 = vmatpush2.msra.mxu0 0.0
    %297 = vmatprep.subr.mxu0 0.0
    %298 = vmatpush2.msra.mxu0 0.0
    %299 = vmatprep.subr.mxu0 0.0
    %300 = vmatpush2.msra.mxu0 0.0
    %301 = vmatprep.subr.mxu0 0.0
    %302 = vmatpush2.msra.mxu0 0.0
    %303 = vmatprep.subr.mxu0 0.0
    %304 = vmatpush2.msra.mxu0 0.0
    %305 = vmatprep.subr.mxu0 0.0
    %306 = vmatpush2.msra.mxu0 0.0
    %307 = vmatprep.subr.mxu0 0.0
    %308 = vmatpush2.msra.mxu0 0.0
    %309 = vmatprep.subr.mxu0 0.0
    %310 = vmatpush2.msra.mxu0 0.0
    %311 = vmatprep.subr.mxu0 0.0
    %312 = vmatpush2.msra.mxu0 0.0
    %313 = vmatprep.subr.mxu0 0.0
    %314 = vmatpush2.msra.mxu0 0.0
    %315 = vmatprep.subr.mxu0 0.0
    %316 = vmatpush2.msra.mxu0 0.0
    %317 = vmatprep.subr.mxu0 0.0
    %318 = vmatpush2.msra.mxu0 0.0
    %319 = vmatprep.mubr.f32.mxu0 0.0
    %320 = vmatmul.mubr.f32.gmra.mxu0 %v69
    %v321 = vpop.f32.mrf.mxu0
    %v322 = vadd.f32 %v138, %v321
    %v323 = vpop.f32.mrf.mxu0
    %324 = vmatprep.mubr.f32.mxu0 0.0
    %325 = vmatmul.mubr.f32.gmra.mxu0 %v70
    %v326 = vpop.f32.mrf.mxu0
    %v327 = vadd.f32 %v138, %v326
    %v328 = vpop.f32.mrf.mxu0
    %329 = vmatprep.mubr.f32.mxu0 0.0
    %330 = vmatmul.mubr.f32.gmra.mxu0 %v71
    %v331 = vpop.f32.mrf.mxu0
    %v332 = vadd.f32 %v138, %v331
    %v333 = vpop.f32.mrf.mxu0
    %334 = vmatprep.mubr.f32.mxu0 0.0
    %335 = vmatmul.mubr.f32.gmra.mxu0 %v72
    %v336 = vpop.f32.mrf.mxu0
    %v337 = vadd.f32 %v138, %v336
    %v338 = vpop.f32.mrf.mxu0
    %339 = vmatprep.mubr.f32.mxu0 0.0
    %340 = vmatmul.mubr.f32.gmra.mxu0 %v73
    %v341 = vpop.f32.mrf.mxu0
    %v342 = vadd.f32 %v138, %v341
    %v343 = vpop.f32.mrf.mxu0
    %344 = vmatprep.mubr.f32.mxu0 0.0
    %345 = vmatmul.mubr.f32.gmra.mxu0 %v74
    %v346 = vpop.f32.mrf.mxu0
    %v347 = vadd.f32 %v138, %v346
    %v348 = vpop.f32.mrf.mxu0
    %349 = vmatprep.mubr.f32.mxu0 0.0
    %350 = vmatmul.mubr.f32.gmra.mxu0 %v75
    %v351 = vpop.f32.mrf.mxu0
    %v352 = vadd.f32 %v138, %v351
    %v353 = vpop.f32.mrf.mxu0
    %354 = vmatprep.mubr.f32.mxu0 0.0
    %355 = vmatmul.mubr.f32.gmra.mxu0 %v76
    %v356 = vpop.f32.mrf.mxu0
    %v357 = vadd.f32 %v138, %v356
    %v358 = vpop.f32.mrf.mxu0
    %359 = vdwg.mxu0
    %360 = vst [vmem:[#allocation2] sm:$0xff] %v209
    %361 = vst [vmem:[#allocation2 + $0x8] sm:$0xff] %v211
    %362 = vst [vmem:[#allocation2 + $0x10] sm:$0xff] %v322
    %363 = vst [vmem:[#allocation2 + $0x18] sm:$0xff] %v215
    %364 = vst [vmem:[#allocation2 + $0x20] sm:$0xff] %v217
    %365 = vst [vmem:[#allocation2 + $0x28] sm:$0xff] %v327
    %366 = vst [vmem:[#allocation2 + $0x30] sm:$0xff] %v221
    %367 = vst [vmem:[#allocation2 + $0x38] sm:$0xff] %v223
    %368 = vst [vmem:[#allocation2 + $0x40] sm:$0xff] %v332
    %369 = vst [vmem:[#allocation2 + $0x48] sm:$0xff] %v227
    %370 = vst [vmem:[#allocation2 + $0x50] sm:$0xff] %v229
    %371 = vst [vmem:[#allocation2 + $0x58] sm:$0xff] %v337
    %372 = vst [vmem:[#allocation2 + $0x60] sm:$0xff] %v233
    %373 = vst [vmem:[#allocation2 + $0x68] sm:$0xff] %v235
    %374 = vst [vmem:[#allocation2 + $0x70] sm:$0xff] %v342
    %375 = vst [vmem:[#allocation2 + $0x78] sm:$0xff] %v239
    %376 = vst [vmem:[#allocation2 + $0x80] sm:$0xff] %v241
    %377 = vst [vmem:[#allocation2 + $0x88] sm:$0xff] %v347
    %378 = vst [vmem:[#allocation2 + $0x90] sm:$0xff] %v245
    %379 = vst [vmem:[#allocation2 + $0x98] sm:$0xff] %v247
    %380 = vst [vmem:[#allocation2 + $0xa0] sm:$0xff] %v352
    %381 = vst [vmem:[#allocation2 + $0xa8] sm:$0xff] %v251
    %382 = vst [vmem:[#allocation2 + $0xb0] sm:$0xff] %v253
    %383 = vst [vmem:[#allocation2 + $0xb8] sm:$0xff] %v357
    %v384 = vld [vmem:[#allocation8] sm:$0xff]
    %v385 = vld [vmem:[#allocation8 + $0x8] sm:$0xff]
    %v386 = vld [vmem:[#allocation8 + $0x10] sm:$0xff]
    %v387 = vld [vmem:[#allocation8 + $0x18] sm:$0xff]
    %v388 = vld [vmem:[#allocation8 + $0x20] sm:$0xff]
    %v389 = vld [vmem:[#allocation8 + $0x28] sm:$0xff]
    %v390 = vld [vmem:[#allocation8 + $0x30] sm:$0xff]
    %v391 = vld [vmem:[#allocation8 + $0x38] sm:$0xff]
    %v392 = vld [vmem:[#allocation8 + $0x40] sm:$0xff]
    %v393 = vld [vmem:[#allocation8 + $0x48] sm:$0xff]
    %v394 = vld [vmem:[#allocation8 + $0x50] sm:$0xff]
    %v395 = vld [vmem:[#allocation8 + $0x58] sm:$0xff]
    %v396 = vld [vmem:[#allocation8 + $0x60] sm:$0xff]
    %v397 = vld [vmem:[#allocation8 + $0x68] sm:$0xff]
    %v398 = vld [vmem:[#allocation8 + $0x70] sm:$0xff]
    %v399 = vld [vmem:[#allocation8 + $0x78] sm:$0xff]
    %v400 = vld [vmem:[#allocation8 + $0x80] sm:$0xff]
    %v401 = vld [vmem:[#allocation8 + $0x88] sm:$0xff]
    %v402 = vld [vmem:[#allocation8 + $0x90] sm:$0xff]
    %v403 = vld [vmem:[#allocation8 + $0x98] sm:$0xff]
    %v404 = vld [vmem:[#allocation8 + $0xa0] sm:$0xff]
    %v405 = vld [vmem:[#allocation8 + $0xa8] sm:$0xff]
    %v406 = vld [vmem:[#allocation8 + $0xb0] sm:$0xff]
    %v407 = vld [vmem:[#allocation8 + $0xb8] sm:$0xff]
    %v408 = vld [vmem:[#allocation8 + $0xc0] sm:$0xff]
    %v409 = vld [vmem:[#allocation8 + $0xc8] sm:$0xff]
    %v410 = vld [vmem:[#allocation8 + $0xd0] sm:$0xff]
    %v411 = vld [vmem:[#allocation8 + $0xd8] sm:$0xff]
    %v412 = vld [vmem:[#allocation8 + $0xe0] sm:$0xff]
    %v413 = vld [vmem:[#allocation8 + $0xe8] sm:$0xff]
    %v414 = vld [vmem:[#allocation8 + $0xf0] sm:$0xff]
    %v415 = vld [vmem:[#allocation8 + $0xf8] sm:$0xff]
    %v416 = vld [vmem:[#allocation8 + $0x100] sm:$0xff]
    %v417 = vld [vmem:[#allocation8 + $0x108] sm:$0xff]
    %v418 = vld [vmem:[#allocation8 + $0x110] sm:$0xff]
    %v419 = vld [vmem:[#allocation8 + $0x118] sm:$0xff]
    %v420 = vld [vmem:[#allocation8 + $0x120] sm:$0xff]
    %v421 = vld [vmem:[#allocation8 + $0x128] sm:$0xff]
    %v422 = vld [vmem:[#allocation8 + $0x130] sm:$0xff]
    %v423 = vld [vmem:[#allocation8 + $0x138] sm:$0xff]
    %v424 = vld [vmem:[#allocation8 + $0x140] sm:$0xff]
    %v425 = vld [vmem:[#allocation8 + $0x148] sm:$0xff]
    %v426 = vld [vmem:[#allocation8 + $0x150] sm:$0xff]
    %v427 = vld [vmem:[#allocation8 + $0x158] sm:$0xff]
    %v428 = vld [vmem:[#allocation8 + $0x160] sm:$0xff]
    %v429 = vld [vmem:[#allocation8 + $0x168] sm:$0xff]
    %v430 = vld [vmem:[#allocation8 + $0x170] sm:$0xff]
    %v431 = vld [vmem:[#allocation8 + $0x178] sm:$0xff]
    %432 = vmatprep.subr.mxu0 %v430
    %433 = vmatpush1.msra.mxu0 %v429
    %434 = vmatprep.subr.mxu0 %v427
    %435 = vmatpush1.msra.mxu0 %v426
    %436 = vmatprep.subr.mxu0 %v424
    %437 = vmatpush1.msra.mxu0 %v423
    %438 = vmatprep.subr.mxu0 %v421
    %439 = vmatpush1.msra.mxu0 %v420
    %440 = vmatprep.subr.mxu0 %v418
    %441 = vmatpush1.msra.mxu0 %v417
    %442 = vmatprep.subr.mxu0 %v415
    %443 = vmatpush1.msra.mxu0 %v414
    %444 = vmatprep.subr.mxu0 %v412
    %445 = vmatpush1.msra.mxu0 %v411
    %446 = vmatprep.subr.mxu0 %v409
    %447 = vmatpush1.msra.mxu0 %v408
    %448 = vmatprep.subr.mxu0 %v406
    %449 = vmatpush1.msra.mxu0 %v405
    %450 = vmatprep.subr.mxu0 %v403
    %451 = vmatpush1.msra.mxu0 %v402
    %452 = vmatprep.subr.mxu0 %v400
    %453 = vmatpush1.msra.mxu0 %v399
    %454 = vmatprep.subr.mxu0 %v397
    %455 = vmatpush1.msra.mxu0 %v396
    %456 = vmatprep.subr.mxu0 %v394
    %457 = vmatpush1.msra.mxu0 %v393
    %458 = vmatprep.subr.mxu0 %v391
    %459 = vmatpush1.msra.mxu0 %v390
    %460 = vmatprep.subr.mxu0 %v388
    %461 = vmatpush1.msra.mxu0 %v387
    %462 = vmatprep.subr.mxu0 %v385
    %463 = vmatpush1.msra.mxu0 %v384
    %464 = vmatprep.subr.mxu0 0.0
    %465 = vmatpush2.msra.mxu0 0.0
    %466 = vmatprep.subr.mxu0 0.0
    %467 = vmatpush2.msra.mxu0 0.0
    %468 = vmatprep.subr.mxu0 0.0
    %469 = vmatpush2.msra.mxu0 0.0
    %470 = vmatprep.subr.mxu0 0.0
    %471 = vmatpush2.msra.mxu0 0.0
    %472 = vmatprep.subr.mxu0 0.0
    %473 = vmatpush2.msra.mxu0 0.0
    %474 = vmatprep.subr.mxu0 0.0
    %475 = vmatpush2.msra.mxu0 0.0
    %476 = vmatprep.subr.mxu0 0.0
    %477 = vmatpush2.msra.mxu0 0.0
    %478 = vmatprep.subr.mxu0 0.0
    %479 = vmatpush2.msra.mxu0 0.0
    %480 = vmatprep.subr.mxu0 0.0
    %481 = vmatpush2.msra.mxu0 0.0
    %482 = vmatprep.subr.mxu0 0.0
    %483 = vmatpush2.msra.mxu0 0.0
    %484 = vmatprep.subr.mxu0 0.0
    %485 = vmatpush2.msra.mxu0 0.0
    %486 = vmatprep.subr.mxu0 0.0
    %487 = vmatpush2.msra.mxu0 0.0
    %488 = vmatprep.subr.mxu0 0.0
    %489 = vmatpush2.msra.mxu0 0.0
    %490 = vmatprep.subr.mxu0 0.0
    %491 = vmatpush2.msra.mxu0 0.0
    %492 = vmatprep.subr.mxu0 0.0
    %493 = vmatpush2.msra.mxu0 0.0
    %494 = vmatprep.subr.mxu0 0.0
    %495 = vmatpush2.msra.mxu0 0.0
    %496 = vmatprep.mubr.f32.mxu0 0.0
    %497 = vmatmul.mubr.f32.gmra.mxu0 0.0
    %v498 = vpop.f32.mrf.mxu0
    %v499 = vadd.f32 0.0, %v498
    %v500 = vpop.f32.mrf.mxu0
    %v501 = vadd.f32 0.0, %v500
    %502 = vdwg.mxu0
    %503 = vmatprep.subr.mxu0 0.0
    %504 = vmatpush1.msra.mxu0 %v431
    %505 = vmatprep.subr.mxu0 0.0
    %506 = vmatpush1.msra.mxu0 %v428
    %507 = vmatprep.subr.mxu0 0.0
    %508 = vmatpush1.msra.mxu0 %v425
    %509 = vmatprep.subr.mxu0 0.0
    %510 = vmatpush1.msra.mxu0 %v422
    %511 = vmatprep.subr.mxu0 0.0
    %512 = vmatpush1.msra.mxu0 %v419
    %513 = vmatprep.subr.mxu0 0.0
    %514 = vmatpush1.msra.mxu0 %v416
    %515 = vmatprep.subr.mxu0 0.0
    %516 = vmatpush1.msra.mxu0 %v413
    %517 = vmatprep.subr.mxu0 0.0
    %518 = vmatpush1.msra.mxu0 %v410
    %519 = vmatprep.subr.mxu0 0.0
    %520 = vmatpush1.msra.mxu0 %v407
    %521 = vmatprep.subr.mxu0 0.0
    %522 = vmatpush1.msra.mxu0 %v404
    %523 = vmatprep.subr.mxu0 0.0
    %524 = vmatpush1.msra.mxu0 %v401
    %525 = vmatprep.subr.mxu0 0.0
    %526 = vmatpush1.msra.mxu0 %v398
    %527 = vmatprep.subr.mxu0 0.0
    %528 = vmatpush1.msra.mxu0 %v395
    %529 = vmatprep.subr.mxu0 0.0
    %530 = vmatpush1.msra.mxu0 %v392
    %531 = vmatprep.subr.mxu0 0.0
    %532 = vmatpush1.msra.mxu0 %v389
    %533 = vmatprep.subr.mxu0 0.0
    %534 = vmatpush1.msra.mxu0 %v386
    %535 = vmatprep.subr.mxu0 0.0
    %536 = vmatpush2.msra.mxu0 0.0
    %537 = vmatprep.subr.mxu0 0.0
    %538 = vmatpush2.msra.mxu0 0.0
    %539 = vmatprep.subr.mxu0 0.0
    %540 = vmatpush2.msra.mxu0 0.0
    %541 = vmatprep.subr.mxu0 0.0
    %542 = vmatpush2.msra.mxu0 0.0
    %543 = vmatprep.subr.mxu0 0.0
    %544 = vmatpush2.msra.mxu0 0.0
    %545 = vmatprep.subr.mxu0 0.0
    %546 = vmatpush2.msra.mxu0 0.0
    %547 = vmatprep.subr.mxu0 0.0
    %548 = vmatpush2.msra.mxu0 0.0
    %549 = vmatprep.subr.mxu0 0.0
    %550 = vmatpush2.msra.mxu0 0.0
    %551 = vmatprep.subr.mxu0 0.0
    %552 = vmatpush2.msra.mxu0 0.0
    %553 = vmatprep.subr.mxu0 0.0
    %554 = vmatpush2.msra.mxu0 0.0
    %555 = vmatprep.subr.mxu0 0.0
    %556 = vmatpush2.msra.mxu0 0.0
    %557 = vmatprep.subr.mxu0 0.0
    %558 = vmatpush2.msra.mxu0 0.0
    %559 = vmatprep.subr.mxu0 0.0
    %560 = vmatpush2.msra.mxu0 0.0
    %561 = vmatprep.subr.mxu0 0.0
    %562 = vmatpush2.msra.mxu0 0.0
    %563 = vmatprep.subr.mxu0 0.0
    %564 = vmatpush2.msra.mxu0 0.0
    %565 = vmatprep.subr.mxu0 0.0
    %566 = vmatpush2.msra.mxu0 0.0
    %567 = vmatprep.mubr.f32.mxu0 0.0
    %568 = vmatmul.mubr.f32.gmra.mxu0 0.0
    %v569 = vpop.f32.mrf.mxu0
    %v570 = vadd.f32 0.0, %v569
    %v571 = vpop.f32.mrf.mxu0
    %572 = vdwg.mxu0
    %v573 = vld [vmem:[#allocation2] sm:$0xff]
    %v574 = vld [vmem:[#allocation2 + $0x8] sm:$0xff]
    %v575 = vld [vmem:[#allocation2 + $0x10] sm:$0xff]
    %v576 = vadd.f32 %v573, %v499
    %v577 = vxor.u32 %v576, 2147483648
    %v578 = vmul.f32 %v577, 1.442695
    %v579 = vpow.pop %v578
    %v580 = vadd.f32 %v579, 1.0
    %v581 = vrcp.pop %v580
    %v582 = vmul.f32 1.0, %v581
    %v583 = vadd.f32 %v574, %v501
    %v584 = vxor.u32 %v583, 2147483648
    %v585 = vmul.f32 %v584, 1.442695
    %v586 = vpow.pop %v585
    %v587 = vadd.f32 %v586, 1.0
    %v588 = vrcp.pop %v587
    %v589 = vmul.f32 1.0, %v588
    %v590 = vld [vmem:[%s4] sm:$0x1]
    %v592 = vlaneseq
    %v593 = vshrl.u32 %v592, 7
    %v594 = vsub.s32 0, %v593
    %v595 = vrot.slane %v590, %v594
    %v597 = vadd.f32 %v570, %v595
    %v598 = vmul.f32 %v582, %v597
    %v599 = vadd.f32 %v575, %v598
    %v600 = vtanh.pop %v599
    %v601 = vsub.f32 1.0, %v589
    %v602 = vmul.f32 %v601, %v600
    %v603 = vmul.f32 %v589, 0.0
    %v604 = vadd.f32 %v602, %v603
    %605 = vmatprep.subr.mxu0 %v430
    %606 = vmatpush1.msra.mxu0 %v429
    %607 = vmatprep.subr.mxu0 %v427
    %608 = vmatpush1.msra.mxu0 %v426
    %609 = vmatprep.subr.mxu0 %v424
    %610 = vmatpush1.msra.mxu0 %v423
    %611 = vmatprep.subr.mxu0 %v421
    %612 = vmatpush1.msra.mxu0 %v420
    %613 = vmatprep.subr.mxu0 %v418
    %614 = vmatpush1.msra.mxu0 %v417
    %615 = vmatprep.subr.mxu0 %v415
    %616 = vmatpush1.msra.mxu0 %v414
    %617 = vmatprep.subr.mxu0 %v412
    %618 = vmatpush1.msra.mxu0 %v411
    %619 = vmatprep.subr.mxu0 %v409
    %620 = vmatpush1.msra.mxu0 %v408
    %621 = vmatprep.subr.mxu0 %v406
    %622 = vmatpush1.msra.mxu0 %v405
    %623 = vmatprep.subr.mxu0 %v403
    %624 = vmatpush1.msra.mxu0 %v402
    %625 = vmatprep.subr.mxu0 %v400
    %626 = vmatpush1.msra.mxu0 %v399
    %627 = vmatprep.subr.mxu0 %v397
    %628 = vmatpush1.msra.mxu0 %v396
    %629 = vmatprep.subr.mxu0 %v394
    %630 = vmatpush1.msra.mxu0 %v393
    %631 = vmatprep.subr.mxu0 %v391
    %632 = vmatpush1.msra.mxu0 %v390
    %633 = vmatprep.subr.mxu0 %v388
    %634 = vmatpush1.msra.mxu0 %v387
    %635 = vmatprep.subr.mxu0 %v385
    %636 = vmatpush1.msra.mxu0 %v384
    %637 = vmatprep.subr.mxu0 0.0
    %638 = vmatpush2.msra.mxu0 0.0
    %639 = vmatprep.subr.mxu0 0.0
    %640 = vmatpush2.msra.mxu0 0.0
    %641 = vmatprep.subr.mxu0 0.0
    %642 = vmatpush2.msra.mxu0 0.0
    %643 = vmatprep.subr.mxu0 0.0
    %644 = vmatpush2.msra.mxu0 0.0
    %645 = vmatprep.subr.mxu0 0.0
    %646 = vmatpush2.msra.mxu0 0.0
    %647 = vmatprep.subr.mxu0 0.0
    %648 = vmatpush2.msra.mxu0 0.0
    %649 = vmatprep.subr.mxu0 0.0
    %650 = vmatpush2.msra.mxu0 0.0
    %651 = vmatprep.subr.mxu0 0.0
    %652 = vmatpush2.msra.mxu0 0.0
    %653 = vmatprep.subr.mxu0 0.0
    %654 = vmatpush2.msra.mxu0 0.0
    %655 = vmatprep.subr.mxu0 0.0
    %656 = vmatpush2.msra.mxu0 0.0
    %657 = vmatprep.subr.mxu0 0.0
    %658 = vmatpush2.msra.mxu0 0.0
    %659 = vmatprep.subr.mxu0 0.0
    %660 = vmatpush2.msra.mxu0 0.0
    %661 = vmatprep.subr.mxu0 0.0
    %662 = vmatpush2.msra.mxu0 0.0
    %663 = vmatprep.subr.mxu0 0.0
    %664 = vmatpush2.msra.mxu0 0.0
    %665 = vmatprep.subr.mxu0 0.0
    %666 = vmatpush2.msra.mxu0 0.0
    %667 = vmatprep.subr.mxu0 0.0
    %668 = vmatpush2.msra.mxu0 0.0
    %669 = vmatprep.mubr.f32.mxu0 0.0
    %670 = vmatmul.mubr.f32.gmra.mxu0 %v604
    %v671 = vpop.f32.mrf.mxu0
    %v672 = vadd.f32 0.0, %v671
    %v673 = vpop.f32.mrf.mxu0
    %v674 = vadd.f32 0.0, %v673
    %675 = vdwg.mxu0
    %676 = vmatprep.subr.mxu0 0.0
    %677 = vmatpush1.msra.mxu0 %v431
    %678 = vmatprep.subr.mxu0 0.0
    %679 = vmatpush1.msra.mxu0 %v428
    %680 = vmatprep.subr.mxu0 0.0
    %681 = vmatpush1.msra.mxu0 %v425
    %682 = vmatprep.subr.mxu0 0.0
    %683 = vmatpush1.msra.mxu0 %v422
    %684 = vmatprep.subr.mxu0 0.0
    %685 = vmatpush1.msra.mxu0 %v419
    %686 = vmatprep.subr.mxu0 0.0
    %687 = vmatpush1.msra.mxu0 %v416
    %688 = vmatprep.subr.mxu0 0.0
    %689 = vmatpush1.msra.mxu0 %v413
    %690 = vmatprep.subr.mxu0 0.0
    %691 = vmatpush1.msra.mxu0 %v410
    %692 = vmatprep.subr.mxu0 0.0
    %693 = vmatpush1.msra.mxu0 %v407
    %694 = vmatprep.subr.mxu0 0.0
    %695 = vmatpush1.msra.mxu0 %v404
    %696 = vmatprep.subr.mxu0 0.0
    %697 = vmatpush1.msra.mxu0 %v401
    %698 = vmatprep.subr.mxu0 0.0
    %699 = vmatpush1.msra.mxu0 %v398
    %700 = vmatprep.subr.mxu0 0.0
    %701 = vmatpush1.msra.mxu0 %v395
    %702 = vmatprep.subr.mxu0 0.0
    %703 = vmatpush1.msra.mxu0 %v392
    %704 = vmatprep.subr.mxu0 0.0
    %705 = vmatpush1.msra.mxu0 %v389
    %706 = vmatprep.subr.mxu0 0.0
    %707 = vmatpush1.msra.mxu0 %v386
    %708 = vmatprep.subr.mxu0 0.0
    %709 = vmatpush2.msra.mxu0 0.0
    %710 = vmatprep.subr.mxu0 0.0
    %711 = vmatpush2.msra.mxu0 0.0
    %712 = vmatprep.subr.mxu0 0.0
    %713 = vmatpush2.msra.mxu0 0.0
    %714 = vmatprep.subr.mxu0 0.0
    %715 = vmatpush2.msra.mxu0 0.0
    %716 = vmatprep.subr.mxu0 0.0
    %717 = vmatpush2.msra.mxu0 0.0
    %718 = vmatprep.subr.mxu0 0.0
    %719 = vmatpush2.msra.mxu0 0.0
    %720 = vmatprep.subr.mxu0 0.0
    %721 = vmatpush2.msra.mxu0 0.0
    %722 = vmatprep.subr.mxu0 0.0
    %723 = vmatpush2.msra.mxu0 0.0
    %724 = vmatprep.subr.mxu0 0.0
    %725 = vmatpush2.msra.mxu0 0.0
    %726 = vmatprep.subr.mxu0 0.0
    %727 = vmatpush2.msra.mxu0 0.0
    %728 = vmatprep.subr.mxu0 0.0
    %729 = vmatpush2.msra.mxu0 0.0
    %730 = vmatprep.subr.mxu0 0.0
    %731 = vmatpush2.msra.mxu0 0.0
    %732 = vmatprep.subr.mxu0 0.0
    %733 = vmatpush2.msra.mxu0 0.0
    %734 = vmatprep.subr.mxu0 0.0
    %735 = vmatpush2.msra.mxu0 0.0
    %736 = vmatprep.subr.mxu0 0.0
    %737 = vmatpush2.msra.mxu0 0.0
    %738 = vmatprep.subr.mxu0 0.0
    %739 = vmatpush2.msra.mxu0 0.0
    %740 = vmatprep.mubr.f32.mxu0 0.0
    %741 = vmatmul.mubr.f32.gmra.mxu0 %v604
    %v742 = vpop.f32.mrf.mxu0
    %v743 = vadd.f32 0.0, %v742
    %v744 = vpop.f32.mrf.mxu0
    %745 = vdwg.mxu0
    %v746 = vld [vmem:[#allocation2 + $0x18] sm:$0xff]
    %v747 = vld [vmem:[#allocation2 + $0x20] sm:$0xff]
    %v748 = vld [vmem:[#allocation2 + $0x28] sm:$0xff]
    %v749 = vadd.f32 %v746, %v672
    %v750 = vxor.u32 %v749, 2147483648
    %v751 = vmul.f32 %v750, 1.442695
    %v752 = vpow.pop %v751
    %v753 = vadd.f32 %v752, 1.0
    %v754 = vrcp.pop %v753
    %v755 = vmul.f32 1.0, %v754
    %v756 = vadd.f32 %v747, %v674
    %v757 = vxor.u32 %v756, 2147483648
    %v758 = vmul.f32 %v757, 1.442695
    %v759 = vpow.pop %v758
    %v760 = vadd.f32 %v759, 1.0
    %v761 = vrcp.pop %v760
    %v762 = vmul.f32 1.0, %v761
    %v763 = vadd.f32 %v743, %v595
    %v764 = vmul.f32 %v755, %v763
    %v765 = vadd.f32 %v748, %v764
    %v766 = vtanh.pop %v765
    %v767 = vsub.f32 1.0, %v762
    %v768 = vmul.f32 %v767, %v766
    %v769 = vmul.f32 %v762, %v604
    %v770 = vadd.f32 %v768, %v769
    %771 = vmatprep.subr.mxu0 %v430
    %772 = vmatpush1.msra.mxu0 %v429
    %773 = vmatprep.subr.mxu0 %v427
    %774 = vmatpush1.msra.mxu0 %v426
    %775 = vmatprep.subr.mxu0 %v424
    %776 = vmatpush1.msra.mxu0 %v423
    %777 = vmatprep.subr.mxu0 %v421
    %778 = vmatpush1.msra.mxu0 %v420
    %779 = vmatprep.subr.mxu0 %v418
    %780 = vmatpush1.msra.mxu0 %v417
    %781 = vmatprep.subr.mxu0 %v415
    %782 = vmatpush1.msra.mxu0 %v414
    %783 = vmatprep.subr.mxu0 %v412
    %784 = vmatpush1.msra.mxu0 %v411
    %785 = vmatprep.subr.mxu0 %v409
    %786 = vmatpush1.msra.mxu0 %v408
    %787 = vmatprep.subr.mxu0 %v406
    %788 = vmatpush1.msra.mxu0 %v405
    %789 = vmatprep.subr.mxu0 %v403
    %790 = vmatpush1.msra.mxu0 %v402
    %791 = vmatprep.subr.mxu0 %v400
    %792 = vmatpush1.msra.mxu0 %v399
    %793 = vmatprep.subr.mxu0 %v397
    %794 = vmatpush1.msra.mxu0 %v396
    %795 = vmatprep.subr.mxu0 %v394
    %796 = vmatpush1.msra.mxu0 %v393
    %797 = vmatprep.subr.mxu0 %v391
    %798 = vmatpush1.msra.mxu0 %v390
    %799 = vmatprep.subr.mxu0 %v388
    %800 = vmatpush1.msra.mxu0 %v387
    %801 = vmatprep.subr.mxu0 %v385
    %802 = vmatpush1.msra.mxu0 %v384
    %803 = vmatprep.subr.mxu0 0.0
    %804 = vmatpush2.msra.mxu0 0.0
    %805 = vmatprep.subr.mxu0 0.0
    %806 = vmatpush2.msra.mxu0 0.0
    %807 = vmatprep.subr.mxu0 0.0
    %808 = vmatpush2.msra.mxu0 0.0
    %809 = vmatprep.subr.mxu0 0.0
    %810 = vmatpush2.msra.mxu0 0.0
    %811 = vmatprep.subr.mxu0 0.0
    %812 = vmatpush2.msra.mxu0 0.0
    %813 = vmatprep.subr.mxu0 0.0
    %814 = vmatpush2.msra.mxu0 0.0
    %815 = vmatprep.subr.mxu0 0.0
    %816 = vmatpush2.msra.mxu0 0.0
    %817 = vmatprep.subr.mxu0 0.0
    %818 = vmatpush2.msra.mxu0 0.0
    %819 = vmatprep.subr.mxu0 0.0
    %820 = vmatpush2.msra.mxu0 0.0
    %821 = vmatprep.subr.mxu0 0.0
    %822 = vmatpush2.msra.mxu0 0.0
    %823 = vmatprep.subr.mxu0 0.0
    %824 = vmatpush2.msra.mxu0 0.0
    %825 = vmatprep.subr.mxu0 0.0
    %826 = vmatpush2.msra.mxu0 0.0
    %827 = vmatprep.subr.mxu0 0.0
    %828 = vmatpush2.msra.mxu0 0.0
    %829 = vmatprep.subr.mxu0 0.0
    %830 = vmatpush2.msra.mxu0 0.0
    %831 = vmatprep.subr.mxu0 0.0
    %832 = vmatpush2.msra.mxu0 0.0
    %833 = vmatprep.subr.mxu0 0.0
    %834 = vmatpush2.msra.mxu0 0.0
    %835 = vmatprep.mubr.f32.mxu0 0.0
    %836 = vmatmul.mubr.f32.gmra.mxu0 %v770
    %v837 = vpop.f32.mrf.mxu0
    %v838 = vadd.f32 0.0, %v837
    %v839 = vpop.f32.mrf.mxu0
    %v840 = vadd.f32 0.0, %v839
    %841 = vdwg.mxu0
    %842 = vmatprep.subr.mxu0 0.0
    %843 = vmatpush1.msra.mxu0 %v431
    %844 = vmatprep.subr.mxu0 0.0
    %845 = vmatpush1.msra.mxu0 %v428
    %846 = vmatprep.subr.mxu0 0.0
    %847 = vmatpush1.msra.mxu0 %v425
    %848 = vmatprep.subr.mxu0 0.0
    %849 = vmatpush1.msra.mxu0 %v422
    %850 = vmatprep.subr.mxu0 0.0
    %851 = vmatpush1.msra.mxu0 %v419
    %852 = vmatprep.subr.mxu0 0.0
    %853 = vmatpush1.msra.mxu0 %v416
    %854 = vmatprep.subr.mxu0 0.0
    %855 = vmatpush1.msra.mxu0 %v413
    %856 = vmatprep.subr.mxu0 0.0
    %857 = vmatpush1.msra.mxu0 %v410
    %858 = vmatprep.subr.mxu0 0.0
    %859 = vmatpush1.msra.mxu0 %v407
    %860 = vmatprep.subr.mxu0 0.0
    %861 = vmatpush1.msra.mxu0 %v404
    %862 = vmatprep.subr.mxu0 0.0
    %863 = vmatpush1.msra.mxu0 %v401
    %864 = vmatprep.subr.mxu0 0.0
    %865 = vmatpush1.msra.mxu0 %v398
    %866 = vmatprep.subr.mxu0 0.0
    %867 = vmatpush1.msra.mxu0 %v395
    %868 = vmatprep.subr.mxu0 0.0
    %869 = vmatpush1.msra.mxu0 %v392
    %870 = vmatprep.subr.mxu0 0.0
    %871 = vmatpush1.msra.mxu0 %v389
    %872 = vmatprep.subr.mxu0 0.0
    %873 = vmatpush1.msra.mxu0 %v386
    %874 = vmatprep.subr.mxu0 0.0
    %875 = vmatpush2.msra.mxu0 0.0
    %876 = vmatprep.subr.mxu0 0.0
    %877 = vmatpush2.msra.mxu0 0.0
    %878 = vmatprep.subr.mxu0 0.0
    %879 = vmatpush2.msra.mxu0 0.0
    %880 = vmatprep.subr.mxu0 0.0
    %881 = vmatpush2.msra.mxu0 0.0
    %882 = vmatprep.subr.mxu0 0.0
    %883 = vmatpush2.msra.mxu0 0.0
    %884 = vmatprep.subr.mxu0 0.0
    %885 = vmatpush2.msra.mxu0 0.0
    %886 = vmatprep.subr.mxu0 0.0
    %887 = vmatpush2.msra.mxu0 0.0
    %888 = vmatprep.subr.mxu0 0.0
    %889 = vmatpush2.msra.mxu0 0.0
    %890 = vmatprep.subr.mxu0 0.0
    %891 = vmatpush2.msra.mxu0 0.0
    %892 = vmatprep.subr.mxu0 0.0
    %893 = vmatpush2.msra.mxu0 0.0
    %894 = vmatprep.subr.mxu0 0.0
    %895 = vmatpush2.msra.mxu0 0.0
    %896 = vmatprep.subr.mxu0 0.0
    %897 = vmatpush2.msra.mxu0 0.0
    %898 = vmatprep.subr.mxu0 0.0
    %899 = vmatpush2.msra.mxu0 0.0
    %900 = vmatprep.subr.mxu0 0.0
    %901 = vmatpush2.msra.mxu0 0.0
    %902 = vmatprep.subr.mxu0 0.0
    %903 = vmatpush2.msra.mxu0 0.0
    %904 = vmatprep.subr.mxu0 0.0
    %905 = vmatpush2.msra.mxu0 0.0
    %906 = vmatprep.mubr.f32.mxu0 0.0
    %907 = vmatmul.mubr.f32.gmra.mxu0 %v770
    %v908 = vpop.f32.mrf.mxu0
    %v909 = vadd.f32 0.0, %v908
    %v910 = vpop.f32.mrf.mxu0
    %911 = vdwg.mxu0
    %v912 = vld [vmem:[#allocation2 + $0x30] sm:$0xff]
    %v913 = vld [vmem:[#allocation2 + $0x38] sm:$0xff]
    %v914 = vld [vmem:[#allocation2 + $0x40] sm:$0xff]
    %v915 = vadd.f32 %v912, %v838
    %v916 = vxor.u32 %v915, 2147483648
    %v917 = vmul.f32 %v916, 1.442695
    %v918 = vpow.pop %v917
    %v919 = vadd.f32 %v918, 1.0
    %v920 = vrcp.pop %v919
    %v921 = vmul.f32 1.0, %v920
    %v922 = vadd.f32 %v913, %v840
    %v923 = vxor.u32 %v922, 2147483648
    %v924 = vmul.f32 %v923, 1.442695
    %v925 = vpow.pop %v924
    %v926 = vadd.f32 %v925, 1.0
    %v927 = vrcp.pop %v926
    %v928 = vmul.f32 1.0, %v927
    %v929 = vadd.f32 %v909, %v595
    %v930 = vmul.f32 %v921, %v929
    %v931 = vadd.f32 %v914, %v930
    %v932 = vtanh.pop %v931
    %v933 = vsub.f32 1.0, %v928
    %v934 = vmul.f32 %v933, %v932
    %v935 = vmul.f32 %v928, %v770
    %v936 = vadd.f32 %v934, %v935
    %937 = vmatprep.subr.mxu0 %v430
    %938 = vmatpush1.msra.mxu0 %v429
    %939 = vmatprep.subr.mxu0 %v427
    %940 = vmatpush1.msra.mxu0 %v426
    %941 = vmatprep.subr.mxu0 %v424
    %942 = vmatpush1.msra.mxu0 %v423
    %943 = vmatprep.subr.mxu0 %v421
    %944 = vmatpush1.msra.mxu0 %v420
    %945 = vmatprep.subr.mxu0 %v418
    %946 = vmatpush1.msra.mxu0 %v417
    %947 = vmatprep.subr.mxu0 %v415
    %948 = vmatpush1.msra.mxu0 %v414
    %949 = vmatprep.subr.mxu0 %v412
    %950 = vmatpush1.msra.mxu0 %v411
    %951 = vmatprep.subr.mxu0 %v409
    %952 = vmatpush1.msra.mxu0 %v408
    %953 = vmatprep.subr.mxu0 %v406
    %954 = vmatpush1.msra.mxu0 %v405
    %955 = vmatprep.subr.mxu0 %v403
    %956 = vmatpush1.msra.mxu0 %v402
    %957 = vmatprep.subr.mxu0 %v400
    %958 = vmatpush1.msra.mxu0 %v399
    %959 = vmatprep.subr.mxu0 %v397
    %960 = vmatpush1.msra.mxu0 %v396
    %961 = vmatprep.subr.mxu0 %v394
    %962 = vmatpush1.msra.mxu0 %v393
    %963 = vmatprep.subr.mxu0 %v391
    %964 = vmatpush1.msra.mxu0 %v390
    %965 = vmatprep.subr.mxu0 %v388
    %966 = vmatpush1.msra.mxu0 %v387
    %967 = vmatprep.subr.mxu0 %v385
    %968 = vmatpush1.msra.mxu0 %v384
    %969 = vmatprep.subr.mxu0 0.0
    %970 = vmatpush2.msra.mxu0 0.0
    %971 = vmatprep.subr.mxu0 0.0
    %972 = vmatpush2.msra.mxu0 0.0
    %973 = vmatprep.subr.mxu0 0.0
    %974 = vmatpush2.msra.mxu0 0.0
    %975 = vmatprep.subr.mxu0 0.0
    %976 = vmatpush2.msra.mxu0 0.0
    %977 = vmatprep.subr.mxu0 0.0
    %978 = vmatpush2.msra.mxu0 0.0
    %979 = vmatprep.subr.mxu0 0.0
    %980 = vmatpush2.msra.mxu0 0.0
    %981 = vmatprep.subr.mxu0 0.0
    %982 = vmatpush2.msra.mxu0 0.0
    %983 = vmatprep.subr.mxu0 0.0
    %984 = vmatpush2.msra.mxu0 0.0
    %985 = vmatprep.subr.mxu0 0.0
    %986 = vmatpush2.msra.mxu0 0.0
    %987 = vmatprep.subr.mxu0 0.0
    %988 = vmatpush2.msra.mxu0 0.0
    %989 = vmatprep.subr.mxu0 0.0
    %990 = vmatpush2.msra.mxu0 0.0
    %991 = vmatprep.subr.mxu0 0.0
    %992 = vmatpush2.msra.mxu0 0.0
    %993 = vmatprep.subr.mxu0 0.0
    %994 = vmatpush2.msra.mxu0 0.0
    %995 = vmatprep.subr.mxu0 0.0
    %996 = vmatpush2.msra.mxu0 0.0
    %997 = vmatprep.subr.mxu0 0.0
    %998 = vmatpush2.msra.mxu0 0.0
    %999 = vmatprep.subr.mxu0 0.0
    %1000 = vmatpush2.msra.mxu0 0.0
    %1001 = vmatprep.mubr.f32.mxu0 0.0
    %1002 = vmatmul.mubr.f32.gmra.mxu0 %v936
    %v1003 = vpop.f32.mrf.mxu0
    %v1004 = vadd.f32 0.0, %v1003
    %v1005 = vpop.f32.mrf.mxu0
    %v1006 = vadd.f32 0.0, %v1005
    %1007 = vdwg.mxu0
    %1008 = vmatprep.subr.mxu0 0.0
    %1009 = vmatpush1.msra.mxu0 %v431
    %1010 = vmatprep.subr.mxu0 0.0
    %1011 = vmatpush1.msra.mxu0 %v428
    %1012 = vmatprep.subr.mxu0 0.0
    %1013 = vmatpush1.msra.mxu0 %v425
    %1014 = vmatprep.subr.mxu0 0.0
    %1015 = vmatpush1.msra.mxu0 %v422
    %1016 = vmatprep.subr.mxu0 0.0
    %1017 = vmatpush1.msra.mxu0 %v419
    %1018 = vmatprep.subr.mxu0 0.0
    %1019 = vmatpush1.msra.mxu0 %v416
    %1020 = vmatprep.subr.mxu0 0.0
    %1021 = vmatpush1.msra.mxu0 %v413
    %1022 = vmatprep.subr.mxu0 0.0
    %1023 = vmatpush1.msra.mxu0 %v410
    %1024 = vmatprep.subr.mxu0 0.0
    %1025 = vmatpush1.msra.mxu0 %v407
    %1026 = vmatprep.subr.mxu0 0.0
    %1027 = vmatpush1.msra.mxu0 %v404
    %1028 = vmatprep.subr.mxu0 0.0
    %1029 = vmatpush1.msra.mxu0 %v401
    %1030 = vmatprep.subr.mxu0 0.0
    %1031 = vmatpush1.msra.mxu0 %v398
    %1032 = vmatprep.subr.mxu0 0.0
    %1033 = vmatpush1.msra.mxu0 %v395
    %1034 = vmatprep.subr.mxu0 0.0
    %1035 = vmatpush1.msra.mxu0 %v392
    %1036 = vmatprep.subr.mxu0 0.0
    %1037 = vmatpush1.msra.mxu0 %v389
    %1038 = vmatprep.subr.mxu0 0.0
    %1039 = vmatpush1.msra.mxu0 %v386
    %1040 = vmatprep.subr.mxu0 0.0
    %1041 = vmatpush2.msra.mxu0 0.0
    %1042 = vmatprep.subr.mxu0 0.0
    %1043 = vmatpush2.msra.mxu0 0.0
    %1044 = vmatprep.subr.mxu0 0.0
    %1045 = vmatpush2.msra.mxu0 0.0
    %1046 = vmatprep.subr.mxu0 0.0
    %1047 = vmatpush2.msra.mxu0 0.0
    %1048 = vmatprep.subr.mxu0 0.0
    %1049 = vmatpush2.msra.mxu0 0.0
    %1050 = vmatprep.subr.mxu0 0.0
    %1051 = vmatpush2.msra.mxu0 0.0
    %1052 = vmatprep.subr.mxu0 0.0
    %1053 = vmatpush2.msra.mxu0 0.0
    %1054 = vmatprep.subr.mxu0 0.0
    %1055 = vmatpush2.msra.mxu0 0.0
    %1056 = vmatprep.subr.mxu0 0.0
    %1057 = vmatpush2.msra.mxu0 0.0
    %1058 = vmatprep.subr.mxu0 0.0
    %1059 = vmatpush2.msra.mxu0 0.0
    %1060 = vmatprep.subr.mxu0 0.0
    %1061 = vmatpush2.msra.mxu0 0.0
    %1062 = vmatprep.subr.mxu0 0.0
    %1063 = vmatpush2.msra.mxu0 0.0
    %1064 = vmatprep.subr.mxu0 0.0
    %1065 = vmatpush2.msra.mxu0 0.0
    %1066 = vmatprep.subr.mxu0 0.0
    %1067 = vmatpush2.msra.mxu0 0.0
    %1068 = vmatprep.subr.mxu0 0.0
    %1069 = vmatpush2.msra.mxu0 0.0
    %1070 = vmatprep.subr.mxu0 0.0
    %1071 = vmatpush2.msra.mxu0 0.0
    %1072 = vmatprep.mubr.f32.mxu0 0.0
    %1073 = vmatmul.mubr.f32.gmra.mxu0 %v936
    %v1074 = vpop.f32.mrf.mxu0
    %v1075 = vadd.f32 0.0, %v1074
    %v1076 = vpop.f32.mrf.mxu0
    %1077 = vdwg.mxu0
    %v1078 = vld [vmem:[#allocation2 + $0x48] sm:$0xff]
    %v1079 = vld [vmem:[#allocation2 + $0x50] sm:$0xff]
    %v1080 = vld [vmem:[#allocation2 + $0x58] sm:$0xff]
    %v1081 = vadd.f32 %v1078, %v1004
    %v1082 = vxor.u32 %v1081, 2147483648
    %v1083 = vmul.f32 %v1082, 1.442695
    %v1084 = vpow.pop %v1083
    %v1085 = vadd.f32 %v1084, 1.0
    %v1086 = vrcp.pop %v1085
    %v1087 = vmul.f32 1.0, %v1086
    %v1088 = vadd.f32 %v1079, %v1006
    %v1089 = vxor.u32 %v1088, 2147483648
    %v1090 = vmul.f32 %v1089, 1.442695
    %v1091 = vpow.pop %v1090
    %v1092 = vadd.f32 %v1091, 1.0
    %v1093 = vrcp.pop %v1092
    %v1094 = vmul.f32 1.0, %v1093
    %v1095 = vadd.f32 %v1075, %v595
    %v1096 = vmul.f32 %v1087, %v1095
    %v1097 = vadd.f32 %v1080, %v1096
    %v1098 = vtanh.pop %v1097
    %v1099 = vsub.f32 1.0, %v1094
    %v1100 = vmul.f32 %v1099, %v1098
    %v1101 = vmul.f32 %v1094, %v936
    %v1102 = vadd.f32 %v1100, %v1101
    %1103 = vmatprep.subr.mxu0 %v430
    %1104 = vmatpush1.msra.mxu0 %v429
    %1105 = vmatprep.subr.mxu0 %v427
    %1106 = vmatpush1.msra.mxu0 %v426
    %1107 = vmatprep.subr.mxu0 %v424
    %1108 = vmatpush1.msra.mxu0 %v423
    %1109 = vmatprep.subr.mxu0 %v421
    %1110 = vmatpush1.msra.mxu0 %v420
    %1111 = vmatprep.subr.mxu0 %v418
    %1112 = vmatpush1.msra.mxu0 %v417
    %1113 = vmatprep.subr.mxu0 %v415
    %1114 = vmatpush1.msra.mxu0 %v414
    %1115 = vmatprep.subr.mxu0 %v412
    %1116 = vmatpush1.msra.mxu0 %v411
    %1117 = vmatprep.subr.mxu0 %v409
    %1118 = vmatpush1.msra.mxu0 %v408
    %1119 = vmatprep.subr.mxu0 %v406
    %1120 = vmatpush1.msra.mxu0 %v405
    %1121 = vmatprep.subr.mxu0 %v403
    %1122 = vmatpush1.msra.mxu0 %v402
    %1123 = vmatprep.subr.mxu0 %v400
    %1124 = vmatpush1.msra.mxu0 %v399
    %1125 = vmatprep.subr.mxu0 %v397
    %1126 = vmatpush1.msra.mxu0 %v396
    %1127 = vmatprep.subr.mxu0 %v394
    %1128 = vmatpush1.msra.mxu0 %v393
    %1129 = vmatprep.subr.mxu0 %v391
    %1130 = vmatpush1.msra.mxu0 %v390
    %1131 = vmatprep.subr.mxu0 %v388
    %1132 = vmatpush1.msra.mxu0 %v387
    %1133 = vmatprep.subr.mxu0 %v385
    %1134 = vmatpush1.msra.mxu0 %v384
    %1135 = vmatprep.subr.mxu0 0.0
    %1136 = vmatpush2.msra.mxu0 0.0
    %1137 = vmatprep.subr.mxu0 0.0
    %1138 = vmatpush2.msra.mxu0 0.0
    %1139 = vmatprep.subr.mxu0 0.0
    %1140 = vmatpush2.msra.mxu0 0.0
    %1141 = vmatprep.subr.mxu0 0.0
    %1142 = vmatpush2.msra.mxu0 0.0
    %1143 = vmatprep.subr.mxu0 0.0
    %1144 = vmatpush2.msra.mxu0 0.0
    %1145 = vmatprep.subr.mxu0 0.0
    %1146 = vmatpush2.msra.mxu0 0.0
    %1147 = vmatprep.subr.mxu0 0.0
    %1148 = vmatpush2.msra.mxu0 0.0
    %1149 = vmatprep.subr.mxu0 0.0
    %1150 = vmatpush2.msra.mxu0 0.0
    %1151 = vmatprep.subr.mxu0 0.0
    %1152 = vmatpush2.msra.mxu0 0.0
    %1153 = vmatprep.subr.mxu0 0.0
    %1154 = vmatpush2.msra.mxu0 0.0
    %1155 = vmatprep.subr.mxu0 0.0
    %1156 = vmatpush2.msra.mxu0 0.0
    %1157 = vmatprep.subr.mxu0 0.0
    %1158 = vmatpush2.msra.mxu0 0.0
    %1159 = vmatprep.subr.mxu0 0.0
    %1160 = vmatpush2.msra.mxu0 0.0
    %1161 = vmatprep.subr.mxu0 0.0
    %1162 = vmatpush2.msra.mxu0 0.0
    %1163 = vmatprep.subr.mxu0 0.0
    %1164 = vmatpush2.msra.mxu0 0.0
    %1165 = vmatprep.subr.mxu0 0.0
    %1166 = vmatpush2.msra.mxu0 0.0
    %1167 = vmatprep.mubr.f32.mxu0 0.0
    %1168 = vmatmul.mubr.f32.gmra.mxu0 %v1102
    %v1169 = vpop.f32.mrf.mxu0
    %v1170 = vadd.f32 0.0, %v1169
    %v1171 = vpop.f32.mrf.mxu0
    %v1172 = vadd.f32 0.0, %v1171
    %1173 = vdwg.mxu0
    %1174 = vmatprep.subr.mxu0 0.0
    %1175 = vmatpush1.msra.mxu0 %v431
    %1176 = vmatprep.subr.mxu0 0.0
    %1177 = vmatpush1.msra.mxu0 %v428
    %1178 = vmatprep.subr.mxu0 0.0
    %1179 = vmatpush1.msra.mxu0 %v425
    %1180 = vmatprep.subr.mxu0 0.0
    %1181 = vmatpush1.msra.mxu0 %v422
    %1182 = vmatprep.subr.mxu0 0.0
    %1183 = vmatpush1.msra.mxu0 %v419
    %1184 = vmatprep.subr.mxu0 0.0
    %1185 = vmatpush1.msra.mxu0 %v416
    %1186 = vmatprep.subr.mxu0 0.0
    %1187 = vmatpush1.msra.mxu0 %v413
    %1188 = vmatprep.subr.mxu0 0.0
    %1189 = vmatpush1.msra.mxu0 %v410
    %1190 = vmatprep.subr.mxu0 0.0
    %1191 = vmatpush1.msra.mxu0 %v407
    %1192 = vmatprep.subr.mxu0 0.0
    %1193 = vmatpush1.msra.mxu0 %v404
    %1194 = vmatprep.subr.mxu0 0.0
    %1195 = vmatpush1.msra.mxu0 %v401
    %1196 = vmatprep.subr.mxu0 0.0
    %1197 = vmatpush1.msra.mxu0 %v398
    %1198 = vmatprep.subr.mxu0 0.0
    %1199 = vmatpush1.msra.mxu0 %v395
    %1200 = vmatprep.subr.mxu0 0.0
    %1201 = vmatpush1.msra.mxu0 %v392
    %1202 = vmatprep.subr.mxu0 0.0
    %1203 = vmatpush1.msra.mxu0 %v389
    %1204 = vmatprep.subr.mxu0 0.0
    %1205 = vmatpush1.msra.mxu0 %v386
    %1206 = vmatprep.subr.mxu0 0.0
    %1207 = vmatpush2.msra.mxu0 0.0
    %1208 = vmatprep.subr.mxu0 0.0
    %1209 = vmatpush2.msra.mxu0 0.0
    %1210 = vmatprep.subr.mxu0 0.0
    %1211 = vmatpush2.msra.mxu0 0.0
    %1212 = vmatprep.subr.mxu0 0.0
    %1213 = vmatpush2.msra.mxu0 0.0
    %1214 = vmatprep.subr.mxu0 0.0
    %1215 = vmatpush2.msra.mxu0 0.0
    %1216 = vmatprep.subr.mxu0 0.0
    %1217 = vmatpush2.msra.mxu0 0.0
    %1218 = vmatprep.subr.mxu0 0.0
    %1219 = vmatpush2.msra.mxu0 0.0
    %1220 = vmatprep.subr.mxu0 0.0
    %1221 = vmatpush2.msra.mxu0 0.0
    %1222 = vmatprep.subr.mxu0 0.0
    %1223 = vmatpush2.msra.mxu0 0.0
    %1224 = vmatprep.subr.mxu0 0.0
    %1225 = vmatpush2.msra.mxu0 0.0
    %1226 = vmatprep.subr.mxu0 0.0
    %1227 = vmatpush2.msra.mxu0 0.0
    %1228 = vmatprep.subr.mxu0 0.0
    %1229 = vmatpush2.msra.mxu0 0.0
    %1230 = vmatprep.subr.mxu0 0.0
    %1231 = vmatpush2.msra.mxu0 0.0
    %1232 = vmatprep.subr.mxu0 0.0
    %1233 = vmatpush2.msra.mxu0 0.0
    %1234 = vmatprep.subr.mxu0 0.0
    %1235 = vmatpush2.msra.mxu0 0.0
    %1236 = vmatprep.subr.mxu0 0.0
    %1237 = vmatpush2.msra.mxu0 0.0
    %1238 = vmatprep.mubr.f32.mxu0 0.0
    %1239 = vmatmul.mubr.f32.gmra.mxu0 %v1102
    %v1240 = vpop.f32.mrf.mxu0
    %v1241 = vadd.f32 0.0, %v1240
    %v1242 = vpop.f32.mrf.mxu0
    %1243 = vdwg.mxu0
    %v1244 = vld [vmem:[#allocation2 + $0x60] sm:$0xff]
    %v1245 = vld [vmem:[#allocation2 + $0x68] sm:$0xff]
    %v1246 = vld [vmem:[#allocation2 + $0x70] sm:$0xff]
    %v1247 = vadd.f32 %v1244, %v1170
    %v1248 = vxor.u32 %v1247, 2147483648
    %v1249 = vmul.f32 %v1248, 1.442695
    %v1250 = vpow.pop %v1249
    %v1251 = vadd.f32 %v1250, 1.0
    %v1252 = vrcp.pop %v1251
    %v1253 = vmul.f32 1.0, %v1252
    %v1254 = vadd.f32 %v1245, %v1172
    %v1255 = vxor.u32 %v1254, 2147483648
    %v1256 = vmul.f32 %v1255, 1.442695
    %v1257 = vpow.pop %v1256
    %v1258 = vadd.f32 %v1257, 1.0
    %v1259 = vrcp.pop %v1258
    %v1260 = vmul.f32 1.0, %v1259
    %v1261 = vadd.f32 %v1241, %v595
    %v1262 = vmul.f32 %v1253, %v1261
    %v1263 = vadd.f32 %v1246, %v1262
    %v1264 = vtanh.pop %v1263
    %v1265 = vsub.f32 1.0, %v1260
    %v1266 = vmul.f32 %v1265, %v1264
    %v1267 = vmul.f32 %v1260, %v1102
    %v1268 = vadd.f32 %v1266, %v1267
    %1269 = vmatprep.subr.mxu0 %v430
    %1270 = vmatpush1.msra.mxu0 %v429
    %1271 = vmatprep.subr.mxu0 %v427
    %1272 = vmatpush1.msra.mxu0 %v426
    %1273 = vmatprep.subr.mxu0 %v424
    %1274 = vmatpush1.msra.mxu0 %v423
    %1275 = vmatprep.subr.mxu0 %v421
    %1276 = vmatpush1.msra.mxu0 %v420
    %1277 = vmatprep.subr.mxu0 %v418
    %1278 = vmatpush1.msra.mxu0 %v417
    %1279 = vmatprep.subr.mxu0 %v415
    %1280 = vmatpush1.msra.mxu0 %v414
    %1281 = vmatprep.subr.mxu0 %v412
    %1282 = vmatpush1.msra.mxu0 %v411
    %1283 = vmatprep.subr.mxu0 %v409
    %1284 = vmatpush1.msra.mxu0 %v408
    %1285 = vmatprep.subr.mxu0 %v406
    %1286 = vmatpush1.msra.mxu0 %v405
    %1287 = vmatprep.subr.mxu0 %v403
    %1288 = vmatpush1.msra.mxu0 %v402
    %1289 = vmatprep.subr.mxu0 %v400
    %1290 = vmatpush1.msra.mxu0 %v399
    %1291 = vmatprep.subr.mxu0 %v397
    %1292 = vmatpush1.msra.mxu0 %v396
    %1293 = vmatprep.subr.mxu0 %v394
    %1294 = vmatpush1.msra.mxu0 %v393
    %1295 = vmatprep.subr.mxu0 %v391
    %1296 = vmatpush1.msra.mxu0 %v390
    %1297 = vmatprep.subr.mxu0 %v388
    %1298 = vmatpush1.msra.mxu0 %v387
    %1299 = vmatprep.subr.mxu0 %v385
    %1300 = vmatpush1.msra.mxu0 %v384
    %1301 = vmatprep.subr.mxu0 0.0
    %1302 = vmatpush2.msra.mxu0 0.0
    %1303 = vmatprep.subr.mxu0 0.0
    %1304 = vmatpush2.msra.mxu0 0.0
    %1305 = vmatprep.subr.mxu0 0.0
    %1306 = vmatpush2.msra.mxu0 0.0
    %1307 = vmatprep.subr.mxu0 0.0
    %1308 = vmatpush2.msra.mxu0 0.0
    %1309 = vmatprep.subr.mxu0 0.0
    %1310 = vmatpush2.msra.mxu0 0.0
    %1311 = vmatprep.subr.mxu0 0.0
    %1312 = vmatpush2.msra.mxu0 0.0
    %1313 = vmatprep.subr.mxu0 0.0
    %1314 = vmatpush2.msra.mxu0 0.0
    %1315 = vmatprep.subr.mxu0 0.0
    %1316 = vmatpush2.msra.mxu0 0.0
    %1317 = vmatprep.subr.mxu0 0.0
    %1318 = vmatpush2.msra.mxu0 0.0
    %1319 = vmatprep.subr.mxu0 0.0
    %1320 = vmatpush2.msra.mxu0 0.0
    %1321 = vmatprep.subr.mxu0 0.0
    %1322 = vmatpush2.msra.mxu0 0.0
    %1323 = vmatprep.subr.mxu0 0.0
    %1324 = vmatpush2.msra.mxu0 0.0
    %1325 = vmatprep.subr.mxu0 0.0
    %1326 = vmatpush2.msra.mxu0 0.0
    %1327 = vmatprep.subr.mxu0 0.0
    %1328 = vmatpush2.msra.mxu0 0.0
    %1329 = vmatprep.subr.mxu0 0.0
    %1330 = vmatpush2.msra.mxu0 0.0
    %1331 = vmatprep.subr.mxu0 0.0
    %1332 = vmatpush2.msra.mxu0 0.0
    %1333 = vmatprep.mubr.f32.mxu0 0.0
    %1334 = vmatmul.mubr.f32.gmra.mxu0 %v1268
    %v1335 = vpop.f32.mrf.mxu0
    %v1336 = vadd.f32 0.0, %v1335
    %v1337 = vpop.f32.mrf.mxu0
    %v1338 = vadd.f32 0.0, %v1337
    %1339 = vdwg.mxu0
    %1340 = vmatprep.subr.mxu0 0.0
    %1341 = vmatpush1.msra.mxu0 %v431
    %1342 = vmatprep.subr.mxu0 0.0
    %1343 = vmatpush1.msra.mxu0 %v428
    %1344 = vmatprep.subr.mxu0 0.0
    %1345 = vmatpush1.msra.mxu0 %v425
    %1346 = vmatprep.subr.mxu0 0.0
    %1347 = vmatpush1.msra.mxu0 %v422
    %1348 = vmatprep.subr.mxu0 0.0
    %1349 = vmatpush1.msra.mxu0 %v419
    %1350 = vmatprep.subr.mxu0 0.0
    %1351 = vmatpush1.msra.mxu0 %v416
    %1352 = vmatprep.subr.mxu0 0.0
    %1353 = vmatpush1.msra.mxu0 %v413
    %1354 = vmatprep.subr.mxu0 0.0
    %1355 = vmatpush1.msra.mxu0 %v410
    %1356 = vmatprep.subr.mxu0 0.0
    %1357 = vmatpush1.msra.mxu0 %v407
    %1358 = vmatprep.subr.mxu0 0.0
    %1359 = vmatpush1.msra.mxu0 %v404
    %1360 = vmatprep.subr.mxu0 0.0
    %1361 = vmatpush1.msra.mxu0 %v401
    %1362 = vmatprep.subr.mxu0 0.0
    %1363 = vmatpush1.msra.mxu0 %v398
    %1364 = vmatprep.subr.mxu0 0.0
    %1365 = vmatpush1.msra.mxu0 %v395
    %1366 = vmatprep.subr.mxu0 0.0
    %1367 = vmatpush1.msra.mxu0 %v392
    %1368 = vmatprep.subr.mxu0 0.0
    %1369 = vmatpush1.msra.mxu0 %v389
    %1370 = vmatprep.subr.mxu0 0.0
    %1371 = vmatpush1.msra.mxu0 %v386
    %1372 = vmatprep.subr.mxu0 0.0
    %1373 = vmatpush2.msra.mxu0 0.0
    %1374 = vmatprep.subr.mxu0 0.0
    %1375 = vmatpush2.msra.mxu0 0.0
    %1376 = vmatprep.subr.mxu0 0.0
    %1377 = vmatpush2.msra.mxu0 0.0
    %1378 = vmatprep.subr.mxu0 0.0
    %1379 = vmatpush2.msra.mxu0 0.0
    %1380 = vmatprep.subr.mxu0 0.0
    %1381 = vmatpush2.msra.mxu0 0.0
    %1382 = vmatprep.subr.mxu0 0.0
    %1383 = vmatpush2.msra.mxu0 0.0
    %1384 = vmatprep.subr.mxu0 0.0
    %1385 = vmatpush2.msra.mxu0 0.0
    %1386 = vmatprep.subr.mxu0 0.0
    %1387 = vmatpush2.msra.mxu0 0.0
    %1388 = vmatprep.subr.mxu0 0.0
    %1389 = vmatpush2.msra.mxu0 0.0
    %1390 = vmatprep.subr.mxu0 0.0
    %1391 = vmatpush2.msra.mxu0 0.0
    %1392 = vmatprep.subr.mxu0 0.0
    %1393 = vmatpush2.msra.mxu0 0.0
    %1394 = vmatprep.subr.mxu0 0.0
    %1395 = vmatpush2.msra.mxu0 0.0
    %1396 = vmatprep.subr.mxu0 0.0
    %1397 = vmatpush2.msra.mxu0 0.0
    %1398 = vmatprep.subr.mxu0 0.0
    %1399 = vmatpush2.msra.mxu0 0.0
    %1400 = vmatprep.subr.mxu0 0.0
    %1401 = vmatpush2.msra.mxu0 0.0
    %1402 = vmatprep.subr.mxu0 0.0
    %1403 = vmatpush2.msra.mxu0 0.0
    %1404 = vmatprep.mubr.f32.mxu0 0.0
    %1405 = vmatmul.mubr.f32.gmra.mxu0 %v1268
    %v1406 = vpop.f32.mrf.mxu0
    %v1407 = vadd.f32 0.0, %v1406
    %v1408 = vpop.f32.mrf.mxu0
    %1409 = vdwg.mxu0
    %v1410 = vld [vmem:[#allocation2 + $0x78] sm:$0xff]
    %v1411 = vld [vmem:[#allocation2 + $0x80] sm:$0xff]
    %v1412 = vld [vmem:[#allocation2 + $0x88] sm:$0xff]
    %v1413 = vadd.f32 %v1410, %v1336
    %v1414 = vxor.u32 %v1413, 2147483648
    %v1415 = vmul.f32 %v1414, 1.442695
    %v1416 = vpow.pop %v1415
    %v1417 = vadd.f32 %v1416, 1.0
    %v1418 = vrcp.pop %v1417
    %v1419 = vmul.f32 1.0, %v1418
    %v1420 = vadd.f32 %v1411, %v1338
    %v1421 = vxor.u32 %v1420, 2147483648
    %v1422 = vmul.f32 %v1421, 1.442695
    %v1423 = vpow.pop %v1422
    %v1424 = vadd.f32 %v1423, 1.0
    %v1425 = vrcp.pop %v1424
    %v1426 = vmul.f32 1.0, %v1425
    %v1427 = vadd.f32 %v1407, %v595
    %v1428 = vmul.f32 %v1419, %v1427
    %v1429 = vadd.f32 %v1412, %v1428
    %v1430 = vtanh.pop %v1429
    %v1431 = vsub.f32 1.0, %v1426
    %v1432 = vmul.f32 %v1431, %v1430
    %v1433 = vmul.f32 %v1426, %v1268
    %v1434 = vadd.f32 %v1432, %v1433
    %1435 = vmatprep.subr.mxu0 %v430
    %1436 = vmatpush1.msra.mxu0 %v429
    %1437 = vmatprep.subr.mxu0 %v427
    %1438 = vmatpush1.msra.mxu0 %v426
    %1439 = vmatprep.subr.mxu0 %v424
    %1440 = vmatpush1.msra.mxu0 %v423
    %1441 = vmatprep.subr.mxu0 %v421
    %1442 = vmatpush1.msra.mxu0 %v420
    %1443 = vmatprep.subr.mxu0 %v418
    %1444 = vmatpush1.msra.mxu0 %v417
    %1445 = vmatprep.subr.mxu0 %v415
    %1446 = vmatpush1.msra.mxu0 %v414
    %1447 = vmatprep.subr.mxu0 %v412
    %1448 = vmatpush1.msra.mxu0 %v411
    %1449 = vmatprep.subr.mxu0 %v409
    %1450 = vmatpush1.msra.mxu0 %v408
    %1451 = vmatprep.subr.mxu0 %v406
    %1452 = vmatpush1.msra.mxu0 %v405
    %1453 = vmatprep.subr.mxu0 %v403
    %1454 = vmatpush1.msra.mxu0 %v402
    %1455 = vmatprep.subr.mxu0 %v400
    %1456 = vmatpush1.msra.mxu0 %v399
    %1457 = vmatprep.subr.mxu0 %v397
    %1458 = vmatpush1.msra.mxu0 %v396
    %1459 = vmatprep.subr.mxu0 %v394
    %1460 = vmatpush1.msra.mxu0 %v393
    %1461 = vmatprep.subr.mxu0 %v391
    %1462 = vmatpush1.msra.mxu0 %v390
    %1463 = vmatprep.subr.mxu0 %v388
    %1464 = vmatpush1.msra.mxu0 %v387
    %1465 = vmatprep.subr.mxu0 %v385
    %1466 = vmatpush1.msra.mxu0 %v384
    %1467 = vmatprep.subr.mxu0 0.0
    %1468 = vmatpush2.msra.mxu0 0.0
    %1469 = vmatprep.subr.mxu0 0.0
    %1470 = vmatpush2.msra.mxu0 0.0
    %1471 = vmatprep.subr.mxu0 0.0
    %1472 = vmatpush2.msra.mxu0 0.0
    %1473 = vmatprep.subr.mxu0 0.0
    %1474 = vmatpush2.msra.mxu0 0.0
    %1475 = vmatprep.subr.mxu0 0.0
    %1476 = vmatpush2.msra.mxu0 0.0
    %1477 = vmatprep.subr.mxu0 0.0
    %1478 = vmatpush2.msra.mxu0 0.0
    %1479 = vmatprep.subr.mxu0 0.0
    %1480 = vmatpush2.msra.mxu0 0.0
    %1481 = vmatprep.subr.mxu0 0.0
    %1482 = vmatpush2.msra.mxu0 0.0
    %1483 = vmatprep.subr.mxu0 0.0
    %1484 = vmatpush2.msra.mxu0 0.0
    %1485 = vmatprep.subr.mxu0 0.0
    %1486 = vmatpush2.msra.mxu0 0.0
    %1487 = vmatprep.subr.mxu0 0.0
    %1488 = vmatpush2.msra.mxu0 0.0
    %1489 = vmatprep.subr.mxu0 0.0
    %1490 = vmatpush2.msra.mxu0 0.0
    %1491 = vmatprep.subr.mxu0 0.0
    %1492 = vmatpush2.msra.mxu0 0.0
    %1493 = vmatprep.subr.mxu0 0.0
    %1494 = vmatpush2.msra.mxu0 0.0
    %1495 = vmatprep.subr.mxu0 0.0
    %1496 = vmatpush2.msra.mxu0 0.0
    %1497 = vmatprep.subr.mxu0 0.0
    %1498 = vmatpush2.msra.mxu0 0.0
    %1499 = vmatprep.mubr.f32.mxu0 0.0
    %1500 = vmatmul.mubr.f32.gmra.mxu0 %v1434
    %v1501 = vpop.f32.mrf.mxu0
    %v1502 = vadd.f32 0.0, %v1501
    %v1503 = vpop.f32.mrf.mxu0
    %v1504 = vadd.f32 0.0, %v1503
    %1505 = vdwg.mxu0
    %1506 = vmatprep.subr.mxu0 0.0
    %1507 = vmatpush1.msra.mxu0 %v431
    %1508 = vmatprep.subr.mxu0 0.0
    %1509 = vmatpush1.msra.mxu0 %v428
    %1510 = vmatprep.subr.mxu0 0.0
    %1511 = vmatpush1.msra.mxu0 %v425
    %1512 = vmatprep.subr.mxu0 0.0
    %1513 = vmatpush1.msra.mxu0 %v422
    %1514 = vmatprep.subr.mxu0 0.0
    %1515 = vmatpush1.msra.mxu0 %v419
    %1516 = vmatprep.subr.mxu0 0.0
    %1517 = vmatpush1.msra.mxu0 %v416
    %1518 = vmatprep.subr.mxu0 0.0
    %1519 = vmatpush1.msra.mxu0 %v413
    %1520 = vmatprep.subr.mxu0 0.0
    %1521 = vmatpush1.msra.mxu0 %v410
    %1522 = vmatprep.subr.mxu0 0.0
    %1523 = vmatpush1.msra.mxu0 %v407
    %1524 = vmatprep.subr.mxu0 0.0
    %1525 = vmatpush1.msra.mxu0 %v404
    %1526 = vmatprep.subr.mxu0 0.0
    %1527 = vmatpush1.msra.mxu0 %v401
    %1528 = vmatprep.subr.mxu0 0.0
    %1529 = vmatpush1.msra.mxu0 %v398
    %1530 = vmatprep.subr.mxu0 0.0
    %1531 = vmatpush1.msra.mxu0 %v395
    %1532 = vmatprep.subr.mxu0 0.0
    %1533 = vmatpush1.msra.mxu0 %v392
    %1534 = vmatprep.subr.mxu0 0.0
    %1535 = vmatpush1.msra.mxu0 %v389
    %1536 = vmatprep.subr.mxu0 0.0
    %1537 = vmatpush1.msra.mxu0 %v386
    %1538 = vmatprep.subr.mxu0 0.0
    %1539 = vmatpush2.msra.mxu0 0.0
    %1540 = vmatprep.subr.mxu0 0.0
    %1541 = vmatpush2.msra.mxu0 0.0
    %1542 = vmatprep.subr.mxu0 0.0
    %1543 = vmatpush2.msra.mxu0 0.0
    %1544 = vmatprep.subr.mxu0 0.0
    %1545 = vmatpush2.msra.mxu0 0.0
    %1546 = vmatprep.subr.mxu0 0.0
    %1547 = vmatpush2.msra.mxu0 0.0
    %1548 = vmatprep.subr.mxu0 0.0
    %1549 = vmatpush2.msra.mxu0 0.0
    %1550 = vmatprep.subr.mxu0 0.0
    %1551 = vmatpush2.msra.mxu0 0.0
    %1552 = vmatprep.subr.mxu0 0.0
    %1553 = vmatpush2.msra.mxu0 0.0
    %1554 = vmatprep.subr.mxu0 0.0
    %1555 = vmatpush2.msra.mxu0 0.0
    %1556 = vmatprep.subr.mxu0 0.0
    %1557 = vmatpush2.msra.mxu0 0.0
    %1558 = vmatprep.subr.mxu0 0.0
    %1559 = vmatpush2.msra.mxu0 0.0
    %1560 = vmatprep.subr.mxu0 0.0
    %1561 = vmatpush2.msra.mxu0 0.0
    %1562 = vmatprep.subr.mxu0 0.0
    %1563 = vmatpush2.msra.mxu0 0.0
    %1564 = vmatprep.subr.mxu0 0.0
    %1565 = vmatpush2.msra.mxu0 0.0
    %1566 = vmatprep.subr.mxu0 0.0
    %1567 = vmatpush2.msra.mxu0 0.0
    %1568 = vmatprep.subr.mxu0 0.0
    %1569 = vmatpush2.msra.mxu0 0.0
    %1570 = vmatprep.mubr.f32.mxu0 0.0
    %1571 = vmatmul.mubr.f32.gmra.mxu0 %v1434
    %v1572 = vpop.f32.mrf.mxu0
    %v1573 = vadd.f32 0.0, %v1572
    %v1574 = vpop.f32.mrf.mxu0
    %1575 = vdwg.mxu0
    %v1576 = vld [vmem:[#allocation2 + $0x90] sm:$0xff]
    %v1577 = vld [vmem:[#allocation2 + $0x98] sm:$0xff]
    %v1578 = vld [vmem:[#allocation2 + $0xa0] sm:$0xff]
    %v1579 = vadd.f32 %v1576, %v1502
    %v1580 = vxor.u32 %v1579, 2147483648
    %v1581 = vmul.f32 %v1580, 1.442695
    %v1582 = vpow.pop %v1581
    %v1583 = vadd.f32 %v1582, 1.0
    %v1584 = vrcp.pop %v1583
    %v1585 = vmul.f32 1.0, %v1584
    %v1586 = vadd.f32 %v1577, %v1504
    %v1587 = vxor.u32 %v1586, 2147483648
    %v1588 = vmul.f32 %v1587, 1.442695
    %v1589 = vpow.pop %v1588
    %v1590 = vadd.f32 %v1589, 1.0
    %v1591 = vrcp.pop %v1590
    %v1592 = vmul.f32 1.0, %v1591
    %v1593 = vadd.f32 %v1573, %v595
    %v1594 = vmul.f32 %v1585, %v1593
    %v1595 = vadd.f32 %v1578, %v1594
    %v1596 = vtanh.pop %v1595
    %v1597 = vsub.f32 1.0, %v1592
    %v1598 = vmul.f32 %v1597, %v1596
    %v1599 = vmul.f32 %v1592, %v1434
    %v1600 = vadd.f32 %v1598, %v1599
    %1601 = vmatprep.subr.mxu0 %v430
    %1602 = vmatpush1.msra.mxu0 %v429
    %1603 = vmatprep.subr.mxu0 %v427
    %1604 = vmatpush1.msra.mxu0 %v426
    %1605 = vmatprep.subr.mxu0 %v424
    %1606 = vmatpush1.msra.mxu0 %v423
    %1607 = vmatprep.subr.mxu0 %v421
    %1608 = vmatpush1.msra.mxu0 %v420
    %1609 = vmatprep.subr.mxu0 %v418
    %1610 = vmatpush1.msra.mxu0 %v417
    %1611 = vmatprep.subr.mxu0 %v415
    %1612 = vmatpush1.msra.mxu0 %v414
    %1613 = vmatprep.subr.mxu0 %v412
    %1614 = vmatpush1.msra.mxu0 %v411
    %1615 = vmatprep.subr.mxu0 %v409
    %1616 = vmatpush1.msra.mxu0 %v408
    %1617 = vmatprep.subr.mxu0 %v406
    %1618 = vmatpush1.msra.mxu0 %v405
    %1619 = vmatprep.subr.mxu0 %v403
    %1620 = vmatpush1.msra.mxu0 %v402
    %1621 = vmatprep.subr.mxu0 %v400
    %1622 = vmatpush1.msra.mxu0 %v399
    %1623 = vmatprep.subr.mxu0 %v397
    %1624 = vmatpush1.msra.mxu0 %v396
    %1625 = vmatprep.subr.mxu0 %v394
    %1626 = vmatpush1.msra.mxu0 %v393
    %1627 = vmatprep.subr.mxu0 %v391
    %1628 = vmatpush1.msra.mxu0 %v390
    %1629 = vmatprep.subr.mxu0 %v388
    %1630 = vmatpush1.msra.mxu0 %v387
    %1631 = vmatprep.subr.mxu0 %v385
    %1632 = vmatpush1.msra.mxu0 %v384
    %1633 = vmatprep.subr.mxu0 0.0
    %1634 = vmatpush2.msra.mxu0 0.0
    %1635 = vmatprep.subr.mxu0 0.0
    %1636 = vmatpush2.msra.mxu0 0.0
    %1637 = vmatprep.subr.mxu0 0.0
    %1638 = vmatpush2.msra.mxu0 0.0
    %1639 = vmatprep.subr.mxu0 0.0
    %1640 = vmatpush2.msra.mxu0 0.0
    %1641 = vmatprep.subr.mxu0 0.0
    %1642 = vmatpush2.msra.mxu0 0.0
    %1643 = vmatprep.subr.mxu0 0.0
    %1644 = vmatpush2.msra.mxu0 0.0
    %1645 = vmatprep.subr.mxu0 0.0
    %1646 = vmatpush2.msra.mxu0 0.0
    %1647 = vmatprep.subr.mxu0 0.0
    %1648 = vmatpush2.msra.mxu0 0.0
    %1649 = vmatprep.subr.mxu0 0.0
    %1650 = vmatpush2.msra.mxu0 0.0
    %1651 = vmatprep.subr.mxu0 0.0
    %1652 = vmatpush2.msra.mxu0 0.0
    %1653 = vmatprep.subr.mxu0 0.0
    %1654 = vmatpush2.msra.mxu0 0.0
    %1655 = vmatprep.subr.mxu0 0.0
    %1656 = vmatpush2.msra.mxu0 0.0
    %1657 = vmatprep.subr.mxu0 0.0
    %1658 = vmatpush2.msra.mxu0 0.0
    %1659 = vmatprep.subr.mxu0 0.0
    %1660 = vmatpush2.msra.mxu0 0.0
    %1661 = vmatprep.subr.mxu0 0.0
    %1662 = vmatpush2.msra.mxu0 0.0
    %1663 = vmatprep.subr.mxu0 0.0
    %1664 = vmatpush2.msra.mxu0 0.0
    %1665 = vmatprep.mubr.f32.mxu0 0.0
    %1666 = vmatmul.mubr.f32.gmra.mxu0 %v1600
    %v1667 = vpop.f32.mrf.mxu0
    %v1668 = vadd.f32 0.0, %v1667
    %v1669 = vpop.f32.mrf.mxu0
    %v1670 = vadd.f32 0.0, %v1669
    %1671 = vdwg.mxu0
    %1672 = vmatprep.subr.mxu0 0.0
    %1673 = vmatpush1.msra.mxu0 %v431
    %1674 = vmatprep.subr.mxu0 0.0
    %1675 = vmatpush1.msra.mxu0 %v428
    %1676 = vmatprep.subr.mxu0 0.0
    %1677 = vmatpush1.msra.mxu0 %v425
    %1678 = vmatprep.subr.mxu0 0.0
    %1679 = vmatpush1.msra.mxu0 %v422
    %1680 = vmatprep.subr.mxu0 0.0
    %1681 = vmatpush1.msra.mxu0 %v419
    %1682 = vmatprep.subr.mxu0 0.0
    %1683 = vmatpush1.msra.mxu0 %v416
    %1684 = vmatprep.subr.mxu0 0.0
    %1685 = vmatpush1.msra.mxu0 %v413
    %1686 = vmatprep.subr.mxu0 0.0
    %1687 = vmatpush1.msra.mxu0 %v410
    %1688 = vmatprep.subr.mxu0 0.0
    %1689 = vmatpush1.msra.mxu0 %v407
    %1690 = vmatprep.subr.mxu0 0.0
    %1691 = vmatpush1.msra.mxu0 %v404
    %1692 = vmatprep.subr.mxu0 0.0
    %1693 = vmatpush1.msra.mxu0 %v401
    %1694 = vmatprep.subr.mxu0 0.0
    %1695 = vmatpush1.msra.mxu0 %v398
    %1696 = vmatprep.subr.mxu0 0.0
    %1697 = vmatpush1.msra.mxu0 %v395
    %1698 = vmatprep.subr.mxu0 0.0
    %1699 = vmatpush1.msra.mxu0 %v392
    %1700 = vmatprep.subr.mxu0 0.0
    %1701 = vmatpush1.msra.mxu0 %v389
    %1702 = vmatprep.subr.mxu0 0.0
    %1703 = vmatpush1.msra.mxu0 %v386
    %1704 = vmatprep.subr.mxu0 0.0
    %1705 = vmatpush2.msra.mxu0 0.0
    %1706 = vmatprep.subr.mxu0 0.0
    %1707 = vmatpush2.msra.mxu0 0.0
    %1708 = vmatprep.subr.mxu0 0.0
    %1709 = vmatpush2.msra.mxu0 0.0
    %1710 = vmatprep.subr.mxu0 0.0
    %1711 = vmatpush2.msra.mxu0 0.0
    %1712 = vmatprep.subr.mxu0 0.0
    %1713 = vmatpush2.msra.mxu0 0.0
    %1714 = vmatprep.subr.mxu0 0.0
    %1715 = vmatpush2.msra.mxu0 0.0
    %1716 = vmatprep.subr.mxu0 0.0
    %1717 = vmatpush2.msra.mxu0 0.0
    %1718 = vmatprep.subr.mxu0 0.0
    %1719 = vmatpush2.msra.mxu0 0.0
    %1720 = vmatprep.subr.mxu0 0.0
    %1721 = vmatpush2.msra.mxu0 0.0
    %1722 = vmatprep.subr.mxu0 0.0
    %1723 = vmatpush2.msra.mxu0 0.0
    %1724 = vmatprep.subr.mxu0 0.0
    %1725 = vmatpush2.msra.mxu0 0.0
    %1726 = vmatprep.subr.mxu0 0.0
    %1727 = vmatpush2.msra.mxu0 0.0
    %1728 = vmatprep.subr.mxu0 0.0
    %1729 = vmatpush2.msra.mxu0 0.0
    %1730 = vmatprep.subr.mxu0 0.0
    %1731 = vmatpush2.msra.mxu0 0.0
    %1732 = vmatprep.subr.mxu0 0.0
    %1733 = vmatpush2.msra.mxu0 0.0
    %1734 = vmatprep.subr.mxu0 0.0
    %1735 = vmatpush2.msra.mxu0 0.0
    %1736 = vmatprep.mubr.f32.mxu0 0.0
    %1737 = vmatmul.mubr.f32.gmra.mxu0 %v1600
    %v1738 = vpop.f32.mrf.mxu0
    %v1739 = vadd.f32 0.0, %v1738
    %v1740 = vpop.f32.mrf.mxu0
    %1741 = vdwg.mxu0
    %v1742 = vld [vmem:[#allocation2 + $0xa8] sm:$0xff]
    %v1743 = vld [vmem:[#allocation2 + $0xb0] sm:$0xff]
    %v1744 = vld [vmem:[#allocation2 + $0xb8] sm:$0xff]
    %v1745 = vadd.f32 %v1742, %v1668
    %v1746 = vxor.u32 %v1745, 2147483648
    %v1747 = vmul.f32 %v1746, 1.442695
    %v1748 = vpow.pop %v1747
    %v1749 = vadd.f32 %v1748, 1.0
    %v1750 = vrcp.pop %v1749
    %v1751 = vmul.f32 1.0, %v1750
    %v1752 = vadd.f32 %v1743, %v1670
    %v1753 = vxor.u32 %v1752, 2147483648
    %v1754 = vmul.f32 %v1753, 1.442695
    %v1755 = vpow.pop %v1754
    %v1756 = vadd.f32 %v1755, 1.0
    %v1757 = vrcp.pop %v1756
    %v1758 = vmul.f32 1.0, %v1757
    %v1759 = vadd.f32 %v1739, %v595
    %v1760 = vmul.f32 %v1751, %v1759
    %v1761 = vadd.f32 %v1744, %v1760
    %v1762 = vtanh.pop %v1761
    %v1763 = vsub.f32 1.0, %v1758
    %v1764 = vmul.f32 %v1763, %v1762
    %v1765 = vmul.f32 %v1758, %v1600
    %v1766 = vadd.f32 %v1764, %v1765
    %v1767 = vmax.f32 %v1766, 0.0
    %v1768 = vld [vmem:[%s5] sm:$0x1]
    %v1770 = vlaneseq
    %v1771 = vshrl.u32 %v1770, 7
    %v1772 = vsub.s32 0, %v1771
    %v1773 = vrot.slane %v1768, %v1772
    %v1775 = vmul.f32 %v1767, %v1773
    %1776 = vadd.xlane.f32.xlu0 %v1775
    %v1777 = vpop.xlane.xlu0 %1776
    %v1778 = vld [vmem:[#allocation3] sm:$0x1]
    %v1780 = vlaneseq
    %v1781 = vshrl.u32 %v1780, 7
    %v1782 = vsub.s32 0, %v1781
    %v1783 = vrot.slane %v1778, %v1782
    %v1785 = vadd.f32 %v1777, %v1783
    %vm1786 = vcmask 7168
    %1787 = vst.msk [vmem:[%s7] sm:$0xff] %vm1786, %v1785
    // Predicated region
    $region42: #{tpu_custom_call.1} parent=1 // pred_check
      _
    $region43: #{tpu_custom_call.1} parent=1 // pred_check_branch
      %1789 = sbr.rel (0) target = $region45
    $region44: #{tpu_custom_call.1} parent=1 // pred_region
      _
    $region45: #{tpu_custom_call.1} parent=1 // pred_fallthru
      _
    // Predicated region
    $region46: #{tpu_custom_call.1} parent=1 // pred_check
      _
    $region47: #{tpu_custom_call.1} parent=1 // pred_check_branch
      %1791 = sbr.rel (0) target = $region49
    $region48: #{tpu_custom_call.1} parent=1 // pred_region
      _
    $region49: #{tpu_custom_call.1} parent=1 // pred_fallthru
      _
    %1792 = vsyncpa [#allocation5], 1
    %1793 = vsyncpa [#allocation7], 1

</llo_original>
